<compile_context>
chip_gen: v7x
topology: tpu7x:2x2x1
jax: 0.10.0
libtpu: 0.0.40
codegen_flags: <defaults>
</compile_context>

<pallas_src>
import functools

import jax
import jax.numpy as jnp
from jax import lax
from jax.experimental import pallas as pl
from jax.experimental.pallas import tpu as pltpu


def encoder_kernel(x_ref, w1_ref, b1_ref, w2_ref, b2_ref,
                   w3_ref, b3_ref, w4_ref, b4_ref, out_ref, *, L, H, TB):
    """x_ref: (L, TB, C_in) f32 batch block (position-major once flattened).
    w*_ref: (C_in_or_H, 3H) bf16, the three conv taps packed along N.
    b*_ref: (1, H) f32.  out_ref: (TB, 4H) f32 lane-dense slab."""
    M = TB * L

    # bf16 cast + (L, TB, C) -> (M, C) collapse in VMEM (TB is a multiple of 8,
    # so each l is an integral number of sublane tiles -> layout-trivial).
    h = x_ref[...].astype(jnp.bfloat16).reshape(M, -1)

    # In-kernel boundary masks: a handful of VPU ops hidden under the matmuls.
    row = lax.broadcasted_iota(jnp.int32, (M, 1), 0)
    keep_prev = (row >= TB).astype(jnp.float32)       # 0 on rows with l == 0
    keep_next = (row < M - TB).astype(jnp.float32)    # 0 on rows with l == L-1

    layers = ((w1_ref, b1_ref), (w2_ref, b2_ref),
              (w3_ref, b3_ref), (w4_ref, b4_ref))
    for d, (w_ref, b_ref) in enumerate(layers):
        # One fused MXU matmul for all three taps: (M, C) @ (C, 3H) -> f32.
        y3 = jnp.dot(h, w_ref[...], preferred_element_type=jnp.float32)
        t_prev = y3[:, 0:H]            # tap 0 -> multiplies x[l-1]
        t_mid = y3[:, H:2 * H]         # tap 1 -> x[l]
        t_next = y3[:, 2 * H:3 * H]    # tap 2 -> x[l+1]
        y = (t_mid + b_ref[...]
             + pltpu.roll(t_prev, shift=TB, axis=0) * keep_prev     # shift down
             + pltpu.roll(t_next, shift=M - TB, axis=0) * keep_next)  # shift up
        if d < len(layers) - 1:
            a = jnp.maximum(y, 0.0)                           # ReLU (f32)
            pooled = jnp.max(a.reshape(L, TB, H), axis=0)     # elementwise VPU max
            h = a.astype(jnp.bfloat16)                        # next-layer input
        else:
            # Last layer: pool before ReLU (max_l(relu(y)) == relu(max_l(y))).
            pooled = jnp.maximum(jnp.max(y.reshape(L, TB, H), axis=0), 0.0)
        out_ref[:, d * H:(d + 1) * H] = pooled                # 128-lane aligned


def _pick_tb(B, L):
    """Batch-block size: a multiple of 8 (sublane tile) that divides B, keeps
    M = TB*L near the ~512-row MXU sweet spot (v6e/v7x), and leaves >= 2 grid
    steps whenever B allows it (megacore sharding on v7x + DMA overlap)."""
    divisors = [t for t in range(8, B + 1, 8) if B % t == 0]
    if not divisors:
        return B                      # tiny batch fallback: single step, TB == B
    tb = min(divisors, key=lambda t: abs(t * L - 512))
    if tb == B and len(divisors) > 1:
        tb = divisors[-2]             # force >= 2 grid steps
    return tb


def convnet_encoder(sent, params):
    """sent: (seq_len, bsize, word_emb_dim) f32 -- PyTorch input convention.
    params: list of 4 (w, b) with w: (3, C_in, C_out), b: (1, C_out)."""
    L, B, C_in = sent.shape
    H = params[0][0].shape[2]                       # = 2 * enc_lstm_dim

    # Layout requirements of the lane slices / stores and the sublane collapse.
    assert C_in % 128 == 0 and H % 128 == 0, "C_in and H must be multiples of 128"
    TB = _pick_tb(B, L)
    assert B % TB == 0
    assert TB % 8 == 0 or TB == B, "TB must be a sublane multiple (or the full batch)"

    def pack_w(w):
        # (3, C_in, C_out) -> (C_in, 3*C_out): taps side-by-side in N, bf16.
        k, ci, co = w.shape
        return jnp.transpose(w, (1, 0, 2)).reshape(ci, k * co).astype(jnp.bfloat16)

    ws = [pack_w(w) for w, _ in params]
    bs = [b.astype(jnp.float32) for _, b in params]

    def const(shape):
        # Block index never changes across the grid -> Pallas fetches it once.
        return pl.BlockSpec(shape, lambda i: (0,) * len(shape))

    kernel = functools.partial(encoder_kernel, L=L, H=H, TB=TB)

    out = pl.pallas_call(
        kernel,
        out_shape=jax.ShapeDtypeStruct((B, 4 * H), jnp.float32),
        grid_spec=pl.GridSpec(
            grid=(B // TB,),
            in_specs=[
                pl.BlockSpec((L, TB, C_in), lambda i: (0, i, 0)),  # x batch block, f32
                const((C_in, 3 * H)), const((1, H)),               # conv1
                const((H, 3 * H)), const((1, H)),                  # conv2
                const((H, 3 * H)), const((1, H)),                  # conv3
                const((H, 3 * H)), const((1, H)),                  # conv4
            ],
            out_specs=pl.BlockSpec((TB, 4 * H), lambda i: (i, 0)),
        ),
        compiler_params=pltpu.CompilerParams(
            dimension_semantics=("parallel",)),
    )(sent, ws[0], bs[0], ws[1], bs[1], ws[2], bs[2], ws[3], bs[3])

    return out                                      # (B, 4*H) == cat(u1..u4, dim=1)


def reference(sent, params):
    """Plain-JAX f32 reference matching the PyTorch forward exactly."""
    x = jnp.transpose(sent, (1, 2, 0))              # (B, C, L)  (NCL)
    us = []
    for w, b in params:
        w_oik = jnp.transpose(w, (2, 1, 0))         # (C_out, C_in, K)
        x = lax.conv_general_dilated(
            x, w_oik, window_strides=(1,), padding=((1, 1),),
            dimension_numbers=('NCH', 'OIH', 'NCH'))
        x = jnp.maximum(x + b.reshape(1, -1, 1), 0.0)
        us.append(jnp.max(x, axis=2))
    return jnp.concatenate(us, axis=1)


if __name__ == "__main__":
    # config: bsize=16, word_emb_dim=128, enc_lstm_dim=64 (H = 2*64 = 128), seq=16
    # (B=16 gives 2 grid steps of TB=8 -> both v7x TensorCores busy.)
    bsize, word_emb_dim, enc_lstm_dim, seq_len = 16, 128, 64, 16
    H = 2 * enc_lstm_dim

    key = jax.random.PRNGKey(0)
    ks = jax.random.split(key, 9)

    sent = jax.random.normal(ks[0], (seq_len, bsize, word_emb_dim), jnp.float32)
    sent_len = jnp.full((bsize,), seq_len, jnp.int32)   # unused by the forward pass

    def init_conv(kw, kb, c_in, c_out):
        # deterministic init mimicking PyTorch Conv1d default U(-1/sqrt(fan_in*k), +)
        bound = 1.0 / (c_in * 3) ** 0.5
        w = jax.random.uniform(kw, (3, c_in, c_out), jnp.float32, -bound, bound)
        b = jax.random.uniform(kb, (1, c_out), jnp.float32, -bound, bound)
        return w, b

    params = [
        init_conv(ks[1], ks[2], word_emb_dim, H),
        init_conv(ks[3], ks[4], H, H),
        init_conv(ks[5], ks[6], H, H),
        init_conv(ks[7], ks[8], H, H),
    ]

    emb = convnet_encoder(sent, params)                 # forward((sent, sent_len))
    emb = jax.block_until_ready(emb)

    ref = reference(sent, params)
    assert emb.shape == (bsize, 4 * H), emb.shape
    # bf16 matmul inputs + inter-layer bf16 casts -> loosened tolerance vs f32 ref.
    assert jnp.allclose(emb, ref, atol=5e-2, rtol=5e-2), "mismatch vs reference"
    print("KERNEL_OK")
</pallas_src>

<mosaic_0001>
module attributes {stable_mosaic.version = 11 : i64} {
  func.func @encoder_kernel(%arg0: i32, %arg1: memref<16x8x128xf32, #tpu.memory_space<vmem>>, %arg2: memref<128x384xbf16, #tpu.memory_space<vmem>>, %arg3: memref<1x128xf32, #tpu.memory_space<vmem>>, %arg4: memref<128x384xbf16, #tpu.memory_space<vmem>>, %arg5: memref<1x128xf32, #tpu.memory_space<vmem>>, %arg6: memref<128x384xbf16, #tpu.memory_space<vmem>>, %arg7: memref<1x128xf32, #tpu.memory_space<vmem>>, %arg8: memref<128x384xbf16, #tpu.memory_space<vmem>>, %arg9: memref<1x128xf32, #tpu.memory_space<vmem>>, %arg10: memref<8x512xf32, #tpu.memory_space<vmem>>) attributes {dimension_semantics = [#tpu.dimension_semantics<parallel>], iteration_bounds = array<i64: 2>, scalar_prefetch = 0 : i64, scratch_operands = 0 : i64, tpu.core_type = #tpu.core_type<tc>, window_params = [{transform_indices = @transform_0, window_bounds = array<i64: 16, 8, 128>}, {pipeline_mode = #tpu.pipeline_mode<synchronous>, transform_indices = @transform_1, window_bounds = array<i64: 128, 384>}, {pipeline_mode = #tpu.pipeline_mode<synchronous>, transform_indices = @transform_2, window_bounds = array<i64: 1, 128>}, {pipeline_mode = #tpu.pipeline_mode<synchronous>, transform_indices = @transform_3, window_bounds = array<i64: 128, 384>}, {pipeline_mode = #tpu.pipeline_mode<synchronous>, transform_indices = @transform_4, window_bounds = array<i64: 1, 128>}, {pipeline_mode = #tpu.pipeline_mode<synchronous>, transform_indices = @transform_5, window_bounds = array<i64: 128, 384>}, {pipeline_mode = #tpu.pipeline_mode<synchronous>, transform_indices = @transform_6, window_bounds = array<i64: 1, 128>}, {pipeline_mode = #tpu.pipeline_mode<synchronous>, transform_indices = @transform_7, window_bounds = array<i64: 128, 384>}, {pipeline_mode = #tpu.pipeline_mode<synchronous>, transform_indices = @transform_8, window_bounds = array<i64: 1, 128>}, {transform_indices = @transform_9, window_bounds = array<i64: 8, 512>}]} {
    %c0 = arith.constant 0 : index
    %c0_0 = arith.constant 0 : index
    %c0_1 = arith.constant 0 : index
    %0 = vector.load %arg1[%c0, %c0_0, %c0_1] : memref<16x8x128xf32, #tpu.memory_space<vmem>>, vector<16x8x128xf32>
    %1 = arith.truncf %0 : vector<16x8x128xf32> to vector<16x8x128xbf16>
    %2 = vector.shape_cast %1 : vector<16x8x128xbf16> to vector<128x128xbf16>
    %3 = tpu.iota {dimensions = array<i32: 0>} : vector<128x1xi32>
    %c8_i32 = arith.constant 8 : i32
    %4 = vector.broadcast %c8_i32 : i32 to vector<128x1xi32>
    %5 = arith.cmpi sge, %3, %4 : vector<128x1xi32>
    %6 = arith.extui %5 : vector<128x1xi1> to vector<128x1xi32>
    %7 = arith.sitofp %6 : vector<128x1xi32> to vector<128x1xf32>
    %c120_i32 = arith.constant 120 : i32
    %8 = vector.broadcast %c120_i32 : i32 to vector<128x1xi32>
    %9 = arith.cmpi slt, %3, %8 : vector<128x1xi32>
    %10 = arith.extui %9 : vector<128x1xi1> to vector<128x1xi32>
    %11 = arith.sitofp %10 : vector<128x1xi32> to vector<128x1xf32>
    %c0_2 = arith.constant 0 : index
    %c0_3 = arith.constant 0 : index
    %12 = vector.load %arg2[%c0_2, %c0_3] : memref<128x384xbf16, #tpu.memory_space<vmem>>, vector<128x384xbf16>
    %cst = arith.constant dense<0.000000e+00> : vector<128x384xf32>
    %13 = tpu.matmul %2, %12, %cst {dimension_numbers = #tpu.dot_dimension_numbers<[1], [0], [0], [1], [0, 0, 1, 1], [], []>} : vector<128x128xbf16>, vector<128x384xbf16>, vector<128x384xf32> -> vector<128x384xf32>
    %14 = vector.extract_strided_slice %13 {offsets = [0, 0], sizes = [128, 128], strides = [1, 1]} : vector<128x384xf32> to vector<128x128xf32>
    %15 = vector.extract_strided_slice %13 {offsets = [0, 128], sizes = [128, 128], strides = [1, 1]} : vector<128x384xf32> to vector<128x128xf32>
    %16 = vector.extract_strided_slice %13 {offsets = [0, 256], sizes = [128, 128], strides = [1, 1]} : vector<128x384xf32> to vector<128x128xf32>
    %c0_4 = arith.constant 0 : index
    %c0_5 = arith.constant 0 : index
    %17 = vector.load %arg3[%c0_4, %c0_5] : memref<1x128xf32, #tpu.memory_space<vmem>>, vector<1x128xf32>
    %18 = vector.broadcast %17 : vector<1x128xf32> to vector<128x128xf32>
    %19 = arith.addf %15, %18 : vector<128x128xf32>
    %c8_i32_6 = arith.constant 8 : i32
    %20 = tpu.dynamic_rotate %14 by %c8_i32_6 dim 0 : vector<128x128xf32>, i32 -> vector<128x128xf32>
    %21 = vector.broadcast %7 : vector<128x1xf32> to vector<128x128xf32>
    %22 = arith.mulf %20, %21 : vector<128x128xf32>
    %23 = arith.addf %19, %22 : vector<128x128xf32>
    %c120_i32_7 = arith.constant 120 : i32
    %24 = tpu.dynamic_rotate %16 by %c120_i32_7 dim 0 : vector<128x128xf32>, i32 -> vector<128x128xf32>
    %25 = vector.broadcast %11 : vector<128x1xf32> to vector<128x128xf32>
    %26 = arith.mulf %24, %25 : vector<128x128xf32>
    %27 = arith.addf %23, %26 : vector<128x128xf32>
    %cst_8 = arith.constant 0.000000e+00 : f32
    %28 = vector.broadcast %cst_8 : f32 to vector<128x128xf32>
    %29 = arith.maximumf %27, %28 : vector<128x128xf32>
    %30 = vector.shape_cast %29 : vector<128x128xf32> to vector<16x8x128xf32>
    %cst_9 = arith.constant dense<0xFF800000> : vector<8x128xf32>
    %31 = vector.multi_reduction <maximumf>, %30, %cst_9 [0] : vector<16x8x128xf32> to vector<8x128xf32>
    %32 = arith.truncf %29 : vector<128x128xf32> to vector<128x128xbf16>
    %c0_10 = arith.constant 0 : index
    %c0_11 = arith.constant 0 : index
    %33 = vector.load %arg10[%c0_10, %c0_11] : memref<8x512xf32, #tpu.memory_space<vmem>>, vector<8x128xf32>
    tpu.vector_store %arg10[%c0_10, %c0_11], %31 {strides = array<i32>} : memref<8x512xf32, #tpu.memory_space<vmem>>, vector<8x128xf32>,
    %c0_12 = arith.constant 0 : index
    %c0_13 = arith.constant 0 : index
    %34 = vector.load %arg4[%c0_12, %c0_13] : memref<128x384xbf16, #tpu.memory_space<vmem>>, vector<128x384xbf16>
    %cst_14 = arith.constant dense<0.000000e+00> : vector<128x384xf32>
    %35 = tpu.matmul %32, %34, %cst_14 {dimension_numbers = #tpu.dot_dimension_numbers<[1], [0], [0], [1], [0, 0, 1, 1], [], []>} : vector<128x128xbf16>, vector<128x384xbf16>, vector<128x384xf32> -> vector<128x384xf32>
    %36 = vector.extract_strided_slice %35 {offsets = [0, 0], sizes = [128, 128], strides = [1, 1]} : vector<128x384xf32> to vector<128x128xf32>
    %37 = vector.extract_strided_slice %35 {offsets = [0, 128], sizes = [128, 128], strides = [1, 1]} : vector<128x384xf32> to vector<128x128xf32>
    %38 = vector.extract_strided_slice %35 {offsets = [0, 256], sizes = [128, 128], strides = [1, 1]} : vector<128x384xf32> to vector<128x128xf32>
    %c0_15 = arith.constant 0 : index
    %c0_16 = arith.constant 0 : index
    %39 = vector.load %arg5[%c0_15, %c0_16] : memref<1x128xf32, #tpu.memory_space<vmem>>, vector<1x128xf32>
    %40 = vector.broadcast %39 : vector<1x128xf32> to vector<128x128xf32>
    %41 = arith.addf %37, %40 : vector<128x128xf32>
    %c8_i32_17 = arith.constant 8 : i32
    %42 = tpu.dynamic_rotate %36 by %c8_i32_17 dim 0 : vector<128x128xf32>, i32 -> vector<128x128xf32>
    %43 = vector.broadcast %7 : vector<128x1xf32> to vector<128x128xf32>
    %44 = arith.mulf %42, %43 : vector<128x128xf32>
    %45 = arith.addf %41, %44 : vector<128x128xf32>
    %c120_i32_18 = arith.constant 120 : i32
    %46 = tpu.dynamic_rotate %38 by %c120_i32_18 dim 0 : vector<128x128xf32>, i32 -> vector<128x128xf32>
    %47 = vector.broadcast %11 : vector<128x1xf32> to vector<128x128xf32>
    %48 = arith.mulf %46, %47 : vector<128x128xf32>
    %49 = arith.addf %45, %48 : vector<128x128xf32>
    %cst_19 = arith.constant 0.000000e+00 : f32
    %50 = vector.broadcast %cst_19 : f32 to vector<128x128xf32>
    %51 = arith.maximumf %49, %50 : vector<128x128xf32>
    %52 = vector.shape_cast %51 : vector<128x128xf32> to vector<16x8x128xf32>
    %cst_20 = arith.constant dense<0xFF800000> : vector<8x128xf32>
    %53 = vector.multi_reduction <maximumf>, %52, %cst_20 [0] : vector<16x8x128xf32> to vector<8x128xf32>
    %54 = arith.truncf %51 : vector<128x128xf32> to vector<128x128xbf16>
    %c0_21 = arith.constant 0 : index
    %c128 = arith.constant 128 : index
    %55 = vector.load %arg10[%c0_21, %c128] : memref<8x512xf32, #tpu.memory_space<vmem>>, vector<8x128xf32>
    tpu.vector_store %arg10[%c0_21, %c128], %53 {strides = array<i32>} : memref<8x512xf32, #tpu.memory_space<vmem>>, vector<8x128xf32>,
    %c0_22 = arith.constant 0 : index
    %c0_23 = arith.constant 0 : index
    %56 = vector.load %arg6[%c0_22, %c0_23] : memref<128x384xbf16, #tpu.memory_space<vmem>>, vector<128x384xbf16>
    %cst_24 = arith.constant dense<0.000000e+00> : vector<128x384xf32>
    %57 = tpu.matmul %54, %56, %cst_24 {dimension_numbers = #tpu.dot_dimension_numbers<[1], [0], [0], [1], [0, 0, 1, 1], [], []>} : vector<128x128xbf16>, vector<128x384xbf16>, vector<128x384xf32> -> vector<128x384xf32>
    %58 = vector.extract_strided_slice %57 {offsets = [0, 0], sizes = [128, 128], strides = [1, 1]} : vector<128x384xf32> to vector<128x128xf32>
    %59 = vector.extract_strided_slice %57 {offsets = [0, 128], sizes = [128, 128], strides = [1, 1]} : vector<128x384xf32> to vector<128x128xf32>
    %60 = vector.extract_strided_slice %57 {offsets = [0, 256], sizes = [128, 128], strides = [1, 1]} : vector<128x384xf32> to vector<128x128xf32>
    %c0_25 = arith.constant 0 : index
    %c0_26 = arith.constant 0 : index
    %61 = vector.load %arg7[%c0_25, %c0_26] : memref<1x128xf32, #tpu.memory_space<vmem>>, vector<1x128xf32>
    %62 = vector.broadcast %61 : vector<1x128xf32> to vector<128x128xf32>
    %63 = arith.addf %59, %62 : vector<128x128xf32>
    %c8_i32_27 = arith.constant 8 : i32
    %64 = tpu.dynamic_rotate %58 by %c8_i32_27 dim 0 : vector<128x128xf32>, i32 -> vector<128x128xf32>
    %65 = vector.broadcast %7 : vector<128x1xf32> to vector<128x128xf32>
    %66 = arith.mulf %64, %65 : vector<128x128xf32>
    %67 = arith.addf %63, %66 : vector<128x128xf32>
    %c120_i32_28 = arith.constant 120 : i32
    %68 = tpu.dynamic_rotate %60 by %c120_i32_28 dim 0 : vector<128x128xf32>, i32 -> vector<128x128xf32>
    %69 = vector.broadcast %11 : vector<128x1xf32> to vector<128x128xf32>
    %70 = arith.mulf %68, %69 : vector<128x128xf32>
    %71 = arith.addf %67, %70 : vector<128x128xf32>
    %cst_29 = arith.constant 0.000000e+00 : f32
    %72 = vector.broadcast %cst_29 : f32 to vector<128x128xf32>
    %73 = arith.maximumf %71, %72 : vector<128x128xf32>
    %74 = vector.shape_cast %73 : vector<128x128xf32> to vector<16x8x128xf32>
    %cst_30 = arith.constant dense<0xFF800000> : vector<8x128xf32>
    %75 = vector.multi_reduction <maximumf>, %74, %cst_30 [0] : vector<16x8x128xf32> to vector<8x128xf32>
    %76 = arith.truncf %73 : vector<128x128xf32> to vector<128x128xbf16>
    %c0_31 = arith.constant 0 : index
    %c256 = arith.constant 256 : index
    %77 = vector.load %arg10[%c0_31, %c256] : memref<8x512xf32, #tpu.memory_space<vmem>>, vector<8x128xf32>
    tpu.vector_store %arg10[%c0_31, %c256], %75 {strides = array<i32>} : memref<8x512xf32, #tpu.memory_space<vmem>>, vector<8x128xf32>,
    %c0_32 = arith.constant 0 : index
    %c0_33 = arith.constant 0 : index
    %78 = vector.load %arg8[%c0_32, %c0_33] : memref<128x384xbf16, #tpu.memory_space<vmem>>, vector<128x384xbf16>
    %cst_34 = arith.constant dense<0.000000e+00> : vector<128x384xf32>
    %79 = tpu.matmul %76, %78, %cst_34 {dimension_numbers = #tpu.dot_dimension_numbers<[1], [0], [0], [1], [0, 0, 1, 1], [], []>} : vector<128x128xbf16>, vector<128x384xbf16>, vector<128x384xf32> -> vector<128x384xf32>
    %80 = vector.extract_strided_slice %79 {offsets = [0, 0], sizes = [128, 128], strides = [1, 1]} : vector<128x384xf32> to vector<128x128xf32>
    %81 = vector.extract_strided_slice %79 {offsets = [0, 128], sizes = [128, 128], strides = [1, 1]} : vector<128x384xf32> to vector<128x128xf32>
    %82 = vector.extract_strided_slice %79 {offsets = [0, 256], sizes = [128, 128], strides = [1, 1]} : vector<128x384xf32> to vector<128x128xf32>
    %c0_35 = arith.constant 0 : index
    %c0_36 = arith.constant 0 : index
    %83 = vector.load %arg9[%c0_35, %c0_36] : memref<1x128xf32, #tpu.memory_space<vmem>>, vector<1x128xf32>
    %84 = vector.broadcast %83 : vector<1x128xf32> to vector<128x128xf32>
    %85 = arith.addf %81, %84 : vector<128x128xf32>
    %c8_i32_37 = arith.constant 8 : i32
    %86 = tpu.dynamic_rotate %80 by %c8_i32_37 dim 0 : vector<128x128xf32>, i32 -> vector<128x128xf32>
    %87 = vector.broadcast %7 : vector<128x1xf32> to vector<128x128xf32>
    %88 = arith.mulf %86, %87 : vector<128x128xf32>
    %89 = arith.addf %85, %88 : vector<128x128xf32>
    %c120_i32_38 = arith.constant 120 : i32
    %90 = tpu.dynamic_rotate %82 by %c120_i32_38 dim 0 : vector<128x128xf32>, i32 -> vector<128x128xf32>
    %91 = vector.broadcast %11 : vector<128x1xf32> to vector<128x128xf32>
    %92 = arith.mulf %90, %91 : vector<128x128xf32>
    %93 = arith.addf %89, %92 : vector<128x128xf32>
    %94 = vector.shape_cast %93 : vector<128x128xf32> to vector<16x8x128xf32>
    %cst_39 = arith.constant dense<0xFF800000> : vector<8x128xf32>
    %95 = vector.multi_reduction <maximumf>, %94, %cst_39 [0] : vector<16x8x128xf32> to vector<8x128xf32>
    %cst_40 = arith.constant 0.000000e+00 : f32
    %96 = vector.broadcast %cst_40 : f32 to vector<8x128xf32>
    %97 = arith.maximumf %95, %96 : vector<8x128xf32>
    %c0_41 = arith.constant 0 : index
    %c384 = arith.constant 384 : index
    %98 = vector.load %arg10[%c0_41, %c384] : memref<8x512xf32, #tpu.memory_space<vmem>>, vector<8x128xf32>
    tpu.vector_store %arg10[%c0_41, %c384], %97 {strides = array<i32>} : memref<8x512xf32, #tpu.memory_space<vmem>>, vector<8x128xf32>,
    return
  }
  func.func @transform_0(%arg0: i32) -> (i32, i32, i32) {
    %c0_i32 = arith.constant 0 : i32
    %c0_i32_0 = arith.constant 0 : i32
    %c0_i32_1 = arith.constant 0 : i32
    return %c0_i32, %arg0, %c0_i32_0 : i32, i32, i32
  }
  func.func @transform_1(%arg0: i32) -> (i32, i32) {
    %c0_i32 = arith.constant 0 : i32
    %c0_i32_0 = arith.constant 0 : i32
    %c0_i32_1 = arith.constant 0 : i32
    return %c0_i32, %c0_i32_0 : i32, i32
  }
  func.func @transform_2(%arg0: i32) -> (i32, i32) {
    %c0_i32 = arith.constant 0 : i32
    %c0_i32_0 = arith.constant 0 : i32
    %c0_i32_1 = arith.constant 0 : i32
    return %c0_i32, %c0_i32_0 : i32, i32
  }
  func.func @transform_3(%arg0: i32) -> (i32, i32) {
    %c0_i32 = arith.constant 0 : i32
    %c0_i32_0 = arith.constant 0 : i32
    %c0_i32_1 = arith.constant 0 : i32
    return %c0_i32, %c0_i32_0 : i32, i32
  }
  func.func @transform_4(%arg0: i32) -> (i32, i32) {
    %c0_i32 = arith.constant 0 : i32
    %c0_i32_0 = arith.constant 0 : i32
    %c0_i32_1 = arith.constant 0 : i32
    return %c0_i32, %c0_i32_0 : i32, i32
  }
  func.func @transform_5(%arg0: i32) -> (i32, i32) {
    %c0_i32 = arith.constant 0 : i32
    %c0_i32_0 = arith.constant 0 : i32
    %c0_i32_1 = arith.constant 0 : i32
    return %c0_i32, %c0_i32_0 : i32, i32
  }
  func.func @transform_6(%arg0: i32) -> (i32, i32) {
    %c0_i32 = arith.constant 0 : i32
    %c0_i32_0 = arith.constant 0 : i32
    %c0_i32_1 = arith.constant 0 : i32
    return %c0_i32, %c0_i32_0 : i32, i32
  }
  func.func @transform_7(%arg0: i32) -> (i32, i32) {
    %c0_i32 = arith.constant 0 : i32
    %c0_i32_0 = arith.constant 0 : i32
    %c0_i32_1 = arith.constant 0 : i32
    return %c0_i32, %c0_i32_0 : i32, i32
  }
  func.func @transform_8(%arg0: i32) -> (i32, i32) {
    %c0_i32 = arith.constant 0 : i32
    %c0_i32_0 = arith.constant 0 : i32
    %c0_i32_1 = arith.constant 0 : i32
    return %c0_i32, %c0_i32_0 : i32, i32
  }
  func.func @transform_9(%arg0: i32) -> (i32, i32) {
    %c0_i32 = arith.constant 0 : i32
    %c0_i32_0 = arith.constant 0 : i32
    return %arg0, %c0_i32 : i32, i32
  }
}

</mosaic_0001>

<llo_original>
// kernel: tpu_custom_call.1
$region0: #{tpu_custom_call.1}
  #allocation0 [shape = 'u32[]', space=smem, size = 0x4, offset = 0x4, fixed_abs, tag = 'smem constant byte address 0x4 - core index']
  #allocation1 [shape = 'u32[144,128]{1,0:T(1,128)}', space=vmem, size = 0x12000, scoped, tag = 'internal scratch']
  %s0 = inlined_call_operand.hbm [shape: f32[16,16,128], index: 0, kind: input, shape index: {}]
  %s1 = inlined_call_operand.hbm [shape: bf16[128,384], index: 1, kind: input, shape index: {}]
  %s2 = inlined_call_operand.vmem [shape: f32[1,128], index: 2, kind: input, shape index: {}]
  %s3 = inlined_call_operand.hbm [shape: bf16[128,384], index: 3, kind: input, shape index: {}]
  %s4 = inlined_call_operand.vmem [shape: f32[1,128], index: 4, kind: input, shape index: {}]
  %s5 = inlined_call_operand.hbm [shape: bf16[128,384], index: 5, kind: input, shape index: {}]
  %s6 = inlined_call_operand.vmem [shape: f32[1,128], index: 6, kind: input, shape index: {}]
  %s7 = inlined_call_operand.hbm [shape: bf16[128,384], index: 7, kind: input, shape index: {}]
  %s8 = inlined_call_operand.vmem [shape: f32[1,128], index: 8, kind: input, shape index: {}]
  %s9 = inlined_call_operand.hbm [shape: f32[16,512], index: 9, kind: output, shape index: {}]
  %s10 = sld [smem:[#allocation0]]
  $region89: #{tpu_custom_call.1} parent=0
    _
  %s12 = ssub.s32 1, %s10
  %s13 = scalar_select 0, %s12, %s10
  $region1: #{tpu_custom_call.1} parent=0
    #allocation2 [shape = 'u8[131072]{0}', space=vmem, size = 0x20000, scoped, tag = 'input window, operand 0']
    #allocation3 [shape = 's32[2]{0}', space=sflag, size = 0x8, scoped, tag = 'scoped memory for tpu_custom_call.1']
    #allocation4 [shape = 's32[2]{0}', space=sflag, size = 0x8, scoped, tag = 'scoped memory for tpu_custom_call.1']
    #allocation5 [shape = 'u8[98304]{0}', space=vmem, size = 0x18000, scoped, tag = 'input window, operand 1, single buffered']
    #allocation6 [shape = 's32[1]{0}', space=sflag, size = 0x4, scoped, tag = 'scoped memory for tpu_custom_call.1']
    #allocation7 [shape = 'u8[98304]{0}', space=vmem, size = 0x18000, scoped, tag = 'input window, operand 3, single buffered']
    #allocation8 [shape = 'u8[98304]{0}', space=vmem, size = 0x18000, scoped, tag = 'input window, operand 5, single buffered']
    #allocation9 [shape = 's32[1]{0}', space=sflag, size = 0x4, scoped, tag = 'scoped memory for tpu_custom_call.1']
    #allocation10 [shape = 'u8[98304]{0}', space=vmem, size = 0x18000, scoped, tag = 'input window, operand 7, single buffered']
    #allocation11 [shape = 'u8[32768]{0}', space=vmem, size = 0x8000, scoped, tag = 'output window, operand 0']
    %14 = vsyncpa [#allocation3], 0
    %s15 = scalar_lea.sflag [#allocation3], 1
    %16 = vsyncpa %s15, 0
    %17 = vsyncpa [#allocation6], 0
    %18 = vsyncpa [#allocation9], 0
    %19 = vsyncpa [#allocation4], 0
    %s20 = scalar_lea.sflag [#allocation4], 1
    %21 = vsyncpa %s20, 0
    loop: start=0, step=1, limit=4
    $region2: #{tpu_custom_call.1} parent=1 // loop_pre_header
      _
    $region3: #{tpu_custom_call.1} parent=1 // loop_header
      %s23 = sphi 0, %s27
      %p24 = scmp.ge.s32.totalorder %s23, 4
      %s33 = sphi 0, %s35
      %s36 = sphi 0, %s33
      %s37 = sphi 0, %s36
      %s53 = sphi 0, %s37
      %s57 = sphi 0, %s57
      %s59 = sphi 0, %s57
      %s60 = sphi 0, %s59
      %s74 = sphi 0, %s60
      %s78 = sphi 0, %s78
      %s80 = sphi 0, %s78
      %s81 = sphi 0, %s80
      %s95 = sphi 0, %s81
      %s99 = sphi 0, %s99
      %s101 = sphi 0, %s99
      %s102 = sphi 0, %s101
      %s116 = sphi 0, %s102
      %s120 = sphi 0, %s120
      %s122 = sphi 0, %s120
      %s123 = sphi 0, %s122
      %s137 = sphi 0, %s123
      %s141 = sphi 0, %s141
      %s143 = sphi 0, %s141
      %s144 = sphi 0, %s143
      %s158 = sphi 0, %s144
      %s162 = sphi 0, %s162
      %s164 = sphi 0, %s162
      %s165 = sphi 0, %s164
      %s179 = sphi 0, %s165
      %s183 = sphi 0, %s183
      %s185 = sphi 0, %s183
      %s186 = sphi 0, %s185
      %s200 = sphi 0, %s186
      %s204 = sphi 0, %s204
      %s206 = sphi 0, %s204
      %s207 = sphi 0, %s206
      %s221 = sphi 0, %s207
      %s227 = sphi 0, %s229
      %s230 = sphi 0, %s227
      %s231 = sphi 0, %s230
      %s247 = sphi 0, %s231
    $region4: #{tpu_custom_call.1} parent=1 // loop_header_branch
      %26 = sbr.rel (%p24) target = $region8
    $region5: #{tpu_custom_call.1} parent=1 // loop_body
      %s28 = ssub.s32 %s23, 1
      %s29 = ssub.s32 %s23, 2
      %s30 = sadd.s32 %s23, 1
      %s31 = ssub.s32 %s23, %s30
      %p32 = scmp.eq.s32.totalorder %s31, 0
      %s34 = sadd.s32 %s33, 1
      %s35 = scalar_select %p32, %s33, %s34
      %p38 = pneg %p32
      %p39 = scmp.eq.s32.totalorder %s23, 1
      %p40 = por %p38, %p39
      %p41 = scmp.ne.s32.totalorder %s33, %s36
      %p42 = scmp.eq.s32.totalorder %s23, 0
      %p43 = por %p41, %p42
      %p44 = scmp.ne.s32.totalorder %s33, %s36
      %p45 = scmp.eq.s32.totalorder %s28, 1
      %p46 = por %p44, %p45
      %p47 = scmp.ne.s32.totalorder %s36, %s37
      %p48 = scmp.eq.s32.totalorder %s28, 0
      %p49 = por %p47, %p48
      %p50 = scmp.ne.s32.totalorder %s36, %s37
      %p51 = scmp.eq.s32.totalorder %s29, 1
      %p52 = por %p50, %p51
      %p54 = scmp.ne.s32.totalorder %s37, %s53
      %p55 = scmp.eq.s32.totalorder %s29, 0
      %p56 = por %p54, %p55
      %s58 = sadd.s32 %s57, 1
      %p61 = scmp.eq.s32.totalorder %s23, 1
      %p62 = scmp.ne.s32.totalorder %s57, %s59
      %p63 = scmp.eq.s32.totalorder %s23, 0
      %p64 = por %p62, %p63
      %p65 = scmp.ne.s32.totalorder %s57, %s59
      %p66 = scmp.eq.s32.totalorder %s28, 1
      %p67 = por %p65, %p66
      %p68 = scmp.ne.s32.totalorder %s59, %s60
      %p69 = scmp.eq.s32.totalorder %s28, 0
      %p70 = por %p68, %p69
      %p71 = scmp.ne.s32.totalorder %s59, %s60
      %p72 = scmp.eq.s32.totalorder %s29, 1
      %p73 = por %p71, %p72
      %p75 = scmp.ne.s32.totalorder %s60, %s74
      %p76 = scmp.eq.s32.totalorder %s29, 0
      %p77 = por %p75, %p76
      %s79 = sadd.s32 %s78, 1
      %p82 = scmp.eq.s32.totalorder %s23, 1
      %p83 = scmp.ne.s32.totalorder %s78, %s80
      %p84 = scmp.eq.s32.totalorder %s23, 0
      %p85 = por %p83, %p84
      %p86 = scmp.ne.s32.totalorder %s78, %s80
      %p87 = scmp.eq.s32.totalorder %s28, 1
      %p88 = por %p86, %p87
      %p89 = scmp.ne.s32.totalorder %s80, %s81
      %p90 = scmp.eq.s32.totalorder %s28, 0
      %p91 = por %p89, %p90
      %p92 = scmp.ne.s32.totalorder %s80, %s81
      %p93 = scmp.eq.s32.totalorder %s29, 1
      %p94 = por %p92, %p93
      %p96 = scmp.ne.s32.totalorder %s81, %s95
      %p97 = scmp.eq.s32.totalorder %s29, 0
      %p98 = por %p96, %p97
      %s100 = sadd.s32 %s99, 1
      %p103 = scmp.eq.s32.totalorder %s23, 1
      %p104 = scmp.ne.s32.totalorder %s99, %s101
      %p105 = scmp.eq.s32.totalorder %s23, 0
      %p106 = por %p104, %p105
      %p107 = scmp.ne.s32.totalorder %s99, %s101
      %p108 = scmp.eq.s32.totalorder %s28, 1
      %p109 = por %p107, %p108
      %p110 = scmp.ne.s32.totalorder %s101, %s102
      %p111 = scmp.eq.s32.totalorder %s28, 0
      %p112 = por %p110, %p111
      %p113 = scmp.ne.s32.totalorder %s101, %s102
      %p114 = scmp.eq.s32.totalorder %s29, 1
      %p115 = por %p113, %p114
      %p117 = scmp.ne.s32.totalorder %s102, %s116
      %p118 = scmp.eq.s32.totalorder %s29, 0
      %p119 = por %p117, %p118
      %s121 = sadd.s32 %s120, 1
      %p124 = scmp.eq.s32.totalorder %s23, 1
      %p125 = scmp.ne.s32.totalorder %s120, %s122
      %p126 = scmp.eq.s32.totalorder %s23, 0
      %p127 = por %p125, %p126
      %p128 = scmp.ne.s32.totalorder %s120, %s122
      %p129 = scmp.eq.s32.totalorder %s28, 1
      %p130 = por %p128, %p129
      %p131 = scmp.ne.s32.totalorder %s122, %s123
      %p132 = scmp.eq.s32.totalorder %s28, 0
      %p133 = por %p131, %p132
      %p134 = scmp.ne.s32.totalorder %s122, %s123
      %p135 = scmp.eq.s32.totalorder %s29, 1
      %p136 = por %p134, %p135
      %p138 = scmp.ne.s32.totalorder %s123, %s137
      %p139 = scmp.eq.s32.totalorder %s29, 0
      %p140 = por %p138, %p139
      %s142 = sadd.s32 %s141, 1
      %p145 = scmp.eq.s32.totalorder %s23, 1
      %p146 = scmp.ne.s32.totalorder %s141, %s143
      %p147 = scmp.eq.s32.totalorder %s23, 0
      %p148 = por %p146, %p147
      %p149 = scmp.ne.s32.totalorder %s141, %s143
      %p150 = scmp.eq.s32.totalorder %s28, 1
      %p151 = por %p149, %p150
      %p152 = scmp.ne.s32.totalorder %s143, %s144
      %p153 = scmp.eq.s32.totalorder %s28, 0
      %p154 = por %p152, %p153
      %p155 = scmp.ne.s32.totalorder %s143, %s144
      %p156 = scmp.eq.s32.totalorder %s29, 1
      %p157 = por %p155, %p156
      %p159 = scmp.ne.s32.totalorder %s144, %s158
      %p160 = scmp.eq.s32.totalorder %s29, 0
      %p161 = por %p159, %p160
      %s163 = sadd.s32 %s162, 1
      %p166 = scmp.eq.s32.totalorder %s23, 1
      %p167 = scmp.ne.s32.totalorder %s162, %s164
      %p168 = scmp.eq.s32.totalorder %s23, 0
      %p169 = por %p167, %p168
      %p170 = scmp.ne.s32.totalorder %s162, %s164
      %p171 = scmp.eq.s32.totalorder %s28, 1
      %p172 = por %p170, %p171
      %p173 = scmp.ne.s32.totalorder %s164, %s165
      %p174 = scmp.eq.s32.totalorder %s28, 0
      %p175 = por %p173, %p174
      %p176 = scmp.ne.s32.totalorder %s164, %s165
      %p177 = scmp.eq.s32.totalorder %s29, 1
      %p178 = por %p176, %p177
      %p180 = scmp.ne.s32.totalorder %s165, %s179
      %p181 = scmp.eq.s32.totalorder %s29, 0
      %p182 = por %p180, %p181
      %s184 = sadd.s32 %s183, 1
      %p187 = scmp.eq.s32.totalorder %s23, 1
      %p188 = scmp.ne.s32.totalorder %s183, %s185
      %p189 = scmp.eq.s32.totalorder %s23, 0
      %p190 = por %p188, %p189
      %p191 = scmp.ne.s32.totalorder %s183, %s185
      %p192 = scmp.eq.s32.totalorder %s28, 1
      %p193 = por %p191, %p192
      %p194 = scmp.ne.s32.totalorder %s185, %s186
      %p195 = scmp.eq.s32.totalorder %s28, 0
      %p196 = por %p194, %p195
      %p197 = scmp.ne.s32.totalorder %s185, %s186
      %p198 = scmp.eq.s32.totalorder %s29, 1
      %p199 = por %p197, %p198
      %p201 = scmp.ne.s32.totalorder %s186, %s200
      %p202 = scmp.eq.s32.totalorder %s29, 0
      %p203 = por %p201, %p202
      %s205 = sadd.s32 %s204, 1
      %p208 = scmp.eq.s32.totalorder %s23, 1
      %p209 = scmp.ne.s32.totalorder %s204, %s206
      %p210 = scmp.eq.s32.totalorder %s23, 0
      %p211 = por %p209, %p210
      %p212 = scmp.ne.s32.totalorder %s204, %s206
      %p213 = scmp.eq.s32.totalorder %s28, 1
      %p214 = por %p212, %p213
      %p215 = scmp.ne.s32.totalorder %s206, %s207
      %p216 = scmp.eq.s32.totalorder %s28, 0
      %p217 = por %p215, %p216
      %p218 = scmp.ne.s32.totalorder %s206, %s207
      %p219 = scmp.eq.s32.totalorder %s29, 1
      %p220 = por %p218, %p219
      %p222 = scmp.ne.s32.totalorder %s207, %s221
      %p223 = scmp.eq.s32.totalorder %s29, 0
      %p224 = por %p222, %p223
      %s225 = ssub.s32 %s23, %s30
      %p226 = scmp.eq.s32.totalorder %s225, 0
      %s228 = sadd.s32 %s227, 1
      %s229 = scalar_select %p226, %s227, %s228
      %p232 = pneg %p226
      %p233 = scmp.eq.s32.totalorder %s23, 1
      %p234 = por %p232, %p233
      %p235 = scmp.ne.s32.totalorder %s227, %s230
      %p236 = scmp.eq.s32.totalorder %s23, 0
      %p237 = por %p235, %p236
      %p238 = scmp.ne.s32.totalorder %s227, %s230
      %p239 = scmp.eq.s32.totalorder %s28, 1
      %p240 = por %p238, %p239
      %p241 = scmp.ne.s32.totalorder %s230, %s231
      %p242 = scmp.eq.s32.totalorder %s28, 0
      %p243 = por %p241, %p242
      %p244 = scmp.ne.s32.totalorder %s230, %s231
      %p245 = scmp.eq.s32.totalorder %s29, 1
      %p246 = por %p244, %p245
      %p248 = scmp.ne.s32.totalorder %s231, %s247
      %p249 = scmp.eq.s32.totalorder %s29, 0
      %p250 = por %p248, %p249
      %p251 = scmp.le.s32.totalorder 1, %s23
      %p252 = scmp.lt.s32.totalorder %s23, 3
      %p253 = pnand %p251, %p252
      %p254 = pneg %p253
      // Predicated region
      $region9: #{tpu_custom_call.1} parent=5 // pred_check
        _
      $region10: #{tpu_custom_call.1} parent=5 // pred_check_branch
        %256 = sbr.rel (%p253) target = $region12
      $region11: #{tpu_custom_call.1} parent=5 // pred_region
        %s257 = ssub.s32 %s23, 1
        // Predicated region
        $region13: #{tpu_custom_call.1} parent=11 // pred_check
          %p258 = pneg %p70
        $region14: #{tpu_custom_call.1} parent=11 // pred_check_branch
          %260 = sbr.rel (%p258) target = $region16
        $region15: #{tpu_custom_call.1} parent=11 // pred_region
          %s262 = ssub.s32 3072, 3072
          %263 = vsyncadd [#allocation6], %s262
          %s264 = sshll.u32 [#allocation5], 4
          %s265 = int_to_ptr.vmem [resolvable:$true] %s264
          %270 = dma.hbm_to_vmem [thread:$0]  %s1, 3072, %s265, [#allocation6], 192, 192, 12
        $region16: #{tpu_custom_call.1} parent=11 // pred_fallthru
          _
        // Predicated region
        $region17: #{tpu_custom_call.1} parent=11 // pred_check
          %p271 = pneg %p91
        $region18: #{tpu_custom_call.1} parent=11 // pred_check_branch
          %273 = sbr.rel (%p271) target = $region20
        $region19: #{tpu_custom_call.1} parent=11 // pred_region
          _
        $region20: #{tpu_custom_call.1} parent=11 // pred_fallthru
          _
        // Predicated region
        $region21: #{tpu_custom_call.1} parent=11 // pred_check
          %p274 = pneg %p112
        $region22: #{tpu_custom_call.1} parent=11 // pred_check_branch
          %276 = sbr.rel (%p274) target = $region24
        $region23: #{tpu_custom_call.1} parent=11 // pred_region
          %s278 = ssub.s32 3072, 3072
          %279 = vsyncadd [#allocation6], %s278
          %s280 = sshll.u32 [#allocation7], 4
          %s281 = int_to_ptr.vmem [resolvable:$true] %s280
          %286 = dma.hbm_to_vmem [thread:$0]  %s3, 3072, %s281, [#allocation6], 192, 192, 12
        $region24: #{tpu_custom_call.1} parent=11 // pred_fallthru
          _
        // Predicated region
        $region25: #{tpu_custom_call.1} parent=11 // pred_check
          %p287 = pneg %p133
        $region26: #{tpu_custom_call.1} parent=11 // pred_check_branch
          %289 = sbr.rel (%p287) target = $region28
        $region27: #{tpu_custom_call.1} parent=11 // pred_region
          _
        $region28: #{tpu_custom_call.1} parent=11 // pred_fallthru
          _
        // Predicated region
        $region29: #{tpu_custom_call.1} parent=11 // pred_check
          %p290 = pneg %p154
        $region30: #{tpu_custom_call.1} parent=11 // pred_check_branch
          %292 = sbr.rel (%p290) target = $region32
        $region31: #{tpu_custom_call.1} parent=11 // pred_region
          %s294 = ssub.s32 3072, 3072
          %295 = vsyncadd [#allocation9], %s294
          %s296 = sshll.u32 [#allocation8], 4
          %s297 = int_to_ptr.vmem [resolvable:$true] %s296
          %302 = dma.hbm_to_vmem [thread:$0]  %s5, 3072, %s297, [#allocation9], 192, 192, 12
        $region32: #{tpu_custom_call.1} parent=11 // pred_fallthru
          _
        // Predicated region
        $region33: #{tpu_custom_call.1} parent=11 // pred_check
          %p303 = pneg %p175
        $region34: #{tpu_custom_call.1} parent=11 // pred_check_branch
          %305 = sbr.rel (%p303) target = $region36
        $region35: #{tpu_custom_call.1} parent=11 // pred_region
          _
        $region36: #{tpu_custom_call.1} parent=11 // pred_fallthru
          _
        // Predicated region
        $region37: #{tpu_custom_call.1} parent=11 // pred_check
          %p306 = pneg %p196
        $region38: #{tpu_custom_call.1} parent=11 // pred_check_branch
          %308 = sbr.rel (%p306) target = $region40
        $region39: #{tpu_custom_call.1} parent=11 // pred_region
          %s310 = ssub.s32 3072, 3072
          %311 = vsyncadd [#allocation9], %s310
          %s312 = sshll.u32 [#allocation10], 4
          %s313 = int_to_ptr.vmem [resolvable:$true] %s312
          %318 = dma.hbm_to_vmem [thread:$0]  %s7, 3072, %s313, [#allocation9], 192, 192, 12
        $region40: #{tpu_custom_call.1} parent=11 // pred_fallthru
          _
        // Predicated region
        $region41: #{tpu_custom_call.1} parent=11 // pred_check
          %p319 = pneg %p217
        $region42: #{tpu_custom_call.1} parent=11 // pred_check_branch
          %321 = sbr.rel (%p319) target = $region44
        $region43: #{tpu_custom_call.1} parent=11 // pred_region
          _
        $region44: #{tpu_custom_call.1} parent=11 // pred_fallthru
          _
      $region12: #{tpu_custom_call.1} parent=5 // pred_fallthru
        _
      %p322 = scmp.lt.s32.totalorder %s23, 2
      // Predicated region
      $region45: #{tpu_custom_call.1} parent=5 // pred_check
        %p323 = pneg %p322
      $region46: #{tpu_custom_call.1} parent=5 // pred_check_branch
        %325 = sbr.rel (%p323) target = $region48
      $region47: #{tpu_custom_call.1} parent=5 // pred_region
        // Predicated region
        $region49: #{tpu_custom_call.1} parent=47 // pred_check
          %p326 = pneg %p43
        $region50: #{tpu_custom_call.1} parent=47 // pred_check_branch
          %328 = sbr.rel (%p326) target = $region52
        $region51: #{tpu_custom_call.1} parent=47 // pred_region
          %s329 = sand.u32 %s33, 1
          %s330 = scalar_lea.sflag [#allocation3], %s329
          %s331 = sand.u32 %s33, 1
          %s332 = smul.addr %s331, 128
          %s333 = scalar_lea.vmem [#allocation2], %s332
          %s335 = ssub.s32 2048, 2048
          %336 = vsyncadd %s330, %s335
          %s337 = smul.addr %s23, 128
          %s338 = scalar_lea.hbm %s0, %s337
          %s339 = sshll.u32 %s333, 4
          %s340 = int_to_ptr.vmem [resolvable:$true] %s339
          %345 = dma.hbm_to_vmem [thread:$0]  %s338, 2048, %s340, %s330, 256, 128, 8
        $region52: #{tpu_custom_call.1} parent=47 // pred_fallthru
          _
      $region48: #{tpu_custom_call.1} parent=5 // pred_fallthru
        _
      %p346 = scmp.le.s32.totalorder 1, %s23
      %p347 = scmp.lt.s32.totalorder %s23, 3
      %p348 = pnand %p346, %p347
      %p349 = pneg %p348
      // Predicated region
      $region53: #{tpu_custom_call.1} parent=5 // pred_check
        _
      $region54: #{tpu_custom_call.1} parent=5 // pred_check_branch
        %351 = sbr.rel (%p348) target = $region56
      $region55: #{tpu_custom_call.1} parent=5 // pred_region
        %s352 = ssub.s32 %s23, 1
        %s353 = sand.u32 %s36, 1
        %s354 = scalar_lea.sflag [#allocation3], %s353
        %s355 = sand.u32 %s36, 1
        %s356 = smul.addr %s355, 128
        %s357 = scalar_lea.vmem [#allocation2], %s356
        // Predicated region
        $region57: #{tpu_custom_call.1} parent=55 // pred_check
          %p358 = pneg %p49
        $region58: #{tpu_custom_call.1} parent=55 // pred_check_branch
          %360 = sbr.rel (%p358) target = $region60
        $region59: #{tpu_custom_call.1} parent=55 // pred_region
          %361 = dma.done %s354, 2048
        $region60: #{tpu_custom_call.1} parent=55 // pred_fallthru
          _
        // Predicated region
        $region61: #{tpu_custom_call.1} parent=55 // pred_check
          %p362 = pneg %p70
        $region62: #{tpu_custom_call.1} parent=55 // pred_check_branch
          %364 = sbr.rel (%p362) target = $region64
        $region63: #{tpu_custom_call.1} parent=55 // pred_region
          %365 = dma.done [#allocation6], 3072
        $region64: #{tpu_custom_call.1} parent=55 // pred_fallthru
          _
        // Predicated region
        $region65: #{tpu_custom_call.1} parent=55 // pred_check
          %p366 = pneg %p112
        $region66: #{tpu_custom_call.1} parent=55 // pred_check_branch
          %368 = sbr.rel (%p366) target = $region68
        $region67: #{tpu_custom_call.1} parent=55 // pred_region
          %369 = dma.done [#allocation6], 3072
        $region68: #{tpu_custom_call.1} parent=55 // pred_fallthru
          _
        // Predicated region
        $region69: #{tpu_custom_call.1} parent=55 // pred_check
          %p370 = pneg %p154
        $region70: #{tpu_custom_call.1} parent=55 // pred_check_branch
          %372 = sbr.rel (%p370) target = $region72
        $region71: #{tpu_custom_call.1} parent=55 // pred_region
          %373 = dma.done [#allocation9], 3072
        $region72: #{tpu_custom_call.1} parent=55 // pred_fallthru
          _
        // Predicated region
        $region73: #{tpu_custom_call.1} parent=55 // pred_check
          %p374 = pneg %p196
        $region74: #{tpu_custom_call.1} parent=55 // pred_check_branch
          %376 = sbr.rel (%p374) target = $region76
        $region75: #{tpu_custom_call.1} parent=55 // pred_region
          %377 = dma.done [#allocation9], 3072
        $region76: #{tpu_custom_call.1} parent=55 // pred_fallthru
          _
        %s378 = sand.u32 %s36, 1
        %s379 = scalar_lea.sflag [#allocation3], %s378
        %s380 = sand.u32 %s36, 1
        %s381 = smul.addr %s380, 128
        %s382 = scalar_lea.vmem [#allocation2], %s381
        %p383 = pneg %p49
        %p384 = pneg %p46
        %p385 = pneg %p70
        %p386 = pneg %p67
        %p387 = pneg %p91
        %p388 = pneg %p88
        %p389 = pneg %p112
        %p390 = pneg %p109
        %p391 = pneg %p133
        %p392 = pneg %p130
        %p393 = pneg %p154
        %p394 = pneg %p151
        %p395 = pneg %p175
        %p396 = pneg %p172
        %p397 = pneg %p196
        %p398 = pneg %p193
        %p399 = pneg %p217
        %p400 = pneg %p214
        %p401 = pneg %p243
        %p402 = pneg %p240
        %s403 = sand.u32 %s230, 1
        %s404 = scalar_lea.sflag [#allocation4], %s403
        %s405 = sand.u32 %s230, 1
        %s406 = smul.addr %s405, 32
        %s407 = scalar_lea.vmem [#allocation11], %s406
        %v409 = vld [vmem:[%s357] sm:$0xff]
        %v410 = vld [vmem:[%s357 + $0x8] sm:$0xff]
        %v411 = vld [vmem:[%s357 + $0x10] sm:$0xff]
        %v412 = vld [vmem:[%s357 + $0x18] sm:$0xff]
        %v413 = vld [vmem:[%s357 + $0x20] sm:$0xff]
        %v414 = vld [vmem:[%s357 + $0x28] sm:$0xff]
        %v415 = vld [vmem:[%s357 + $0x30] sm:$0xff]
        %v416 = vld [vmem:[%s357 + $0x38] sm:$0xff]
        %v417 = vld [vmem:[%s357 + $0x40] sm:$0xff]
        %v418 = vld [vmem:[%s357 + $0x48] sm:$0xff]
        %v419 = vld [vmem:[%s357 + $0x50] sm:$0xff]
        %v420 = vld [vmem:[%s357 + $0x58] sm:$0xff]
        %v421 = vld [vmem:[%s357 + $0x60] sm:$0xff]
        %v422 = vld [vmem:[%s357 + $0x68] sm:$0xff]
        %v423 = vld [vmem:[%s357 + $0x70] sm:$0xff]
        %v424 = vld [vmem:[%s357 + $0x78] sm:$0xff]
        %v425 = vpack.c.bf16 %v409, %v409
        %v426 = vpack.c.bf16 %v410, %v410
        %v427 = vpack.c.bf16 %v411, %v411
        %v428 = vpack.c.bf16 %v412, %v412
        %v429 = vpack.c.bf16 %v413, %v413
        %v430 = vpack.c.bf16 %v414, %v414
        %v431 = vpack.c.bf16 %v415, %v415
        %v432 = vpack.c.bf16 %v416, %v416
        %v433 = vpack.c.bf16 %v417, %v417
        %v434 = vpack.c.bf16 %v418, %v418
        %v435 = vpack.c.bf16 %v419, %v419
        %v436 = vpack.c.bf16 %v420, %v420
        %v437 = vpack.c.bf16 %v421, %v421
        %v438 = vpack.c.bf16 %v422, %v422
        %v439 = vpack.c.bf16 %v423, %v423
        %v440 = vpack.c.bf16 %v424, %v424
        %v441 = vlaneseq
        %v442 = vshrl.u32 %v441, 7
        %v443 = vadd.s32 %v442, 8
        %v444 = vadd.s32 %v442, 16
        %v445 = vadd.s32 %v442, 24
        %v446 = vadd.s32 %v442, 32
        %v447 = vadd.s32 %v442, 40
        %v448 = vadd.s32 %v442, 48
        %v449 = vadd.s32 %v442, 56
        %v450 = vadd.s32 %v442, 64
        %v451 = vadd.s32 %v442, 72
        %v452 = vadd.s32 %v442, 80
        %v453 = vadd.s32 %v442, 88
        %v454 = vadd.s32 %v442, 96
        %v455 = vadd.s32 %v442, 104
        %v456 = vadd.s32 %v442, 112
        %v457 = vadd.s32 %v442, 120
        %vm458 = vcmp.ge.s32.totalorder %v442, 8
        %vm459 = vcmp.ge.s32.totalorder %v443, 8
        %vm460 = vcmp.ge.s32.totalorder %v444, 8
        %vm461 = vcmp.ge.s32.totalorder %v445, 8
        %vm462 = vcmp.ge.s32.totalorder %v446, 8
        %vm463 = vcmp.ge.s32.totalorder %v447, 8
        %vm464 = vcmp.ge.s32.totalorder %v448, 8
        %vm465 = vcmp.ge.s32.totalorder %v449, 8
        %vm466 = vcmp.ge.s32.totalorder %v450, 8
        %vm467 = vcmp.ge.s32.totalorder %v451, 8
        %vm468 = vcmp.ge.s32.totalorder %v452, 8
        %vm469 = vcmp.ge.s32.totalorder %v453, 8
        %vm470 = vcmp.ge.s32.totalorder %v454, 8
        %vm471 = vcmp.ge.s32.totalorder %v455, 8
        %vm472 = vcmp.ge.s32.totalorder %v456, 8
        %vm473 = vcmp.ge.s32.totalorder %v457, 8
        %v474 = vsel %vm458, 1, 0
        %v475 = vsel %vm459, 1, 0
        %v476 = vsel %vm460, 1, 0
        %v477 = vsel %vm461, 1, 0
        %v478 = vsel %vm462, 1, 0
        %v479 = vsel %vm463, 1, 0
        %v480 = vsel %vm464, 1, 0
        %v481 = vsel %vm465, 1, 0
        %v482 = vsel %vm466, 1, 0
        %v483 = vsel %vm467, 1, 0
        %v484 = vsel %vm468, 1, 0
        %v485 = vsel %vm469, 1, 0
        %v486 = vsel %vm470, 1, 0
        %v487 = vsel %vm471, 1, 0
        %v488 = vsel %vm472, 1, 0
        %v489 = vsel %vm473, 1, 0
        %v490 = vcvt.s32.f32 %v474
        %v491 = vcvt.s32.f32 %v475
        %v492 = vcvt.s32.f32 %v476
        %v493 = vcvt.s32.f32 %v477
        %v494 = vcvt.s32.f32 %v478
        %v495 = vcvt.s32.f32 %v479
        %v496 = vcvt.s32.f32 %v480
        %v497 = vcvt.s32.f32 %v481
        %v498 = vcvt.s32.f32 %v482
        %v499 = vcvt.s32.f32 %v483
        %v500 = vcvt.s32.f32 %v484
        %v501 = vcvt.s32.f32 %v485
        %v502 = vcvt.s32.f32 %v486
        %v503 = vcvt.s32.f32 %v487
        %v504 = vcvt.s32.f32 %v488
        %v505 = vcvt.s32.f32 %v489
        %vm506 = vcmp.lt.s32.totalorder %v442, 120
        %vm507 = vcmp.lt.s32.totalorder %v443, 120
        %vm508 = vcmp.lt.s32.totalorder %v444, 120
        %vm509 = vcmp.lt.s32.totalorder %v445, 120
        %vm510 = vcmp.lt.s32.totalorder %v446, 120
        %vm511 = vcmp.lt.s32.totalorder %v447, 120
        %vm512 = vcmp.lt.s32.totalorder %v448, 120
        %vm513 = vcmp.lt.s32.totalorder %v449, 120
        %vm514 = vcmp.lt.s32.totalorder %v450, 120
        %vm515 = vcmp.lt.s32.totalorder %v451, 120
        %vm516 = vcmp.lt.s32.totalorder %v452, 120
        %vm517 = vcmp.lt.s32.totalorder %v453, 120
        %vm518 = vcmp.lt.s32.totalorder %v454, 120
        %vm519 = vcmp.lt.s32.totalorder %v455, 120
        %vm520 = vcmp.lt.s32.totalorder %v456, 120
        %vm521 = vcmp.lt.s32.totalorder %v457, 120
        %v522 = vsel %vm506, 1, 0
        %v523 = vsel %vm507, 1, 0
        %v524 = vsel %vm508, 1, 0
        %v525 = vsel %vm509, 1, 0
        %v526 = vsel %vm510, 1, 0
        %v527 = vsel %vm511, 1, 0
        %v528 = vsel %vm512, 1, 0
        %v529 = vsel %vm513, 1, 0
        %v530 = vsel %vm514, 1, 0
        %v531 = vsel %vm515, 1, 0
        %v532 = vsel %vm516, 1, 0
        %v533 = vsel %vm517, 1, 0
        %v534 = vsel %vm518, 1, 0
        %v535 = vsel %vm519, 1, 0
        %v536 = vsel %vm520, 1, 0
        %v537 = vsel %vm521, 1, 0
        %v538 = vcvt.s32.f32 %v522
        %v539 = vcvt.s32.f32 %v523
        %v540 = vcvt.s32.f32 %v524
        %v541 = vcvt.s32.f32 %v525
        %v542 = vcvt.s32.f32 %v526
        %v543 = vcvt.s32.f32 %v527
        %v544 = vcvt.s32.f32 %v528
        %v545 = vcvt.s32.f32 %v529
        %v546 = vcvt.s32.f32 %v530
        %v547 = vcvt.s32.f32 %v531
        %v548 = vcvt.s32.f32 %v532
        %v549 = vcvt.s32.f32 %v533
        %v550 = vcvt.s32.f32 %v534
        %v551 = vcvt.s32.f32 %v535
        %v552 = vcvt.s32.f32 %v536
        %v553 = vcvt.s32.f32 %v537
        %v554 = vld [vmem:[#allocation5] sm:$0xff]
        %v555 = vld [vmem:[#allocation5 + $0x8] sm:$0xf]
        %v556 = vld [vmem:[#allocation5 + $0xc] sm:$0xff]
        %v557 = vld [vmem:[#allocation5 + $0x14] sm:$0xf]
        %v558 = vld [vmem:[#allocation5 + $0x18] sm:$0xff]
        %v559 = vld [vmem:[#allocation5 + $0x20] sm:$0xf]
        %v560 = vld [vmem:[#allocation5 + $0x24] sm:$0xff]
        %v561 = vld [vmem:[#allocation5 + $0x2c] sm:$0xf]
        %v562 = vld [vmem:[#allocation5 + $0x30] sm:$0xff]
        %v563 = vld [vmem:[#allocation5 + $0x38] sm:$0xf]
        %v564 = vld [vmem:[#allocation5 + $0x3c] sm:$0xff]
        %v565 = vld [vmem:[#allocation5 + $0x44] sm:$0xf]
        %v566 = vld [vmem:[#allocation5 + $0x48] sm:$0xff]
        %v567 = vld [vmem:[#allocation5 + $0x50] sm:$0xf]
        %v568 = vld [vmem:[#allocation5 + $0x54] sm:$0xff]
        %v569 = vld [vmem:[#allocation5 + $0x5c] sm:$0xf]
        %v570 = vld [vmem:[#allocation5 + $0x60] sm:$0xff]
        %v571 = vld [vmem:[#allocation5 + $0x68] sm:$0xf]
        %v572 = vld [vmem:[#allocation5 + $0x6c] sm:$0xff]
        %v573 = vld [vmem:[#allocation5 + $0x74] sm:$0xf]
        %v574 = vld [vmem:[#allocation5 + $0x78] sm:$0xff]
        %v575 = vld [vmem:[#allocation5 + $0x80] sm:$0xf]
        %v576 = vld [vmem:[#allocation5 + $0x84] sm:$0xff]
        %v577 = vld [vmem:[#allocation5 + $0x8c] sm:$0xf]
        %v578 = vld [vmem:[#allocation5 + $0x90] sm:$0xff]
        %v579 = vld [vmem:[#allocation5 + $0x98] sm:$0xf]
        %v580 = vld [vmem:[#allocation5 + $0x9c] sm:$0xff]
        %v581 = vld [vmem:[#allocation5 + $0xa4] sm:$0xf]
        %v582 = vld [vmem:[#allocation5 + $0xa8] sm:$0xff]
        %v583 = vld [vmem:[#allocation5 + $0xb0] sm:$0xf]
        %v584 = vld [vmem:[#allocation5 + $0xb4] sm:$0xff]
        %v585 = vld [vmem:[#allocation5 + $0xbc] sm:$0xf]
        %v602 = vunpack.c.l.b16 %v425
        %v603 = vunpack.c.l.b16 %v426
        %v604 = vunpack.c.l.b16 %v427
        %v605 = vunpack.c.l.b16 %v428
        %v606 = vunpack.c.l.b16 %v429
        %v607 = vunpack.c.l.b16 %v430
        %v608 = vunpack.c.l.b16 %v431
        %v609 = vunpack.c.l.b16 %v432
        %v610 = vunpack.c.l.b16 %v433
        %v611 = vunpack.c.l.b16 %v434
        %v612 = vunpack.c.l.b16 %v435
        %v613 = vunpack.c.l.b16 %v436
        %v614 = vunpack.c.l.b16 %v437
        %v615 = vunpack.c.l.b16 %v438
        %v616 = vunpack.c.l.b16 %v439
        %v617 = vunpack.c.l.b16 %v440
        %v618 = vpack.c.b16 %v603, %v602
        %v619 = vpack.c.b16 %v605, %v604
        %v620 = vpack.c.b16 %v607, %v606
        %v621 = vpack.c.b16 %v609, %v608
        %v622 = vpack.c.b16 %v611, %v610
        %v623 = vpack.c.b16 %v613, %v612
        %v624 = vpack.c.b16 %v615, %v614
        %v625 = vpack.c.b16 %v617, %v616
        %v666 = vunpack.c.l.b16 %v554
        %v667 = vunpack.c.h.b16 %v554
        %v668 = vunpack.c.l.b16 %v555
        %v669 = vunpack.c.l.b16 %v556
        %v670 = vunpack.c.h.b16 %v556
        %v671 = vunpack.c.l.b16 %v557
        %v672 = vunpack.c.l.b16 %v558
        %v673 = vunpack.c.h.b16 %v558
        %v674 = vunpack.c.l.b16 %v559
        %v675 = vunpack.c.l.b16 %v560
        %v676 = vunpack.c.h.b16 %v560
        %v677 = vunpack.c.l.b16 %v561
        %v678 = vunpack.c.l.b16 %v562
        %v679 = vunpack.c.h.b16 %v562
        %v680 = vunpack.c.l.b16 %v563
        %v681 = vunpack.c.l.b16 %v564
        %v682 = vunpack.c.h.b16 %v564
        %v683 = vunpack.c.l.b16 %v565
        %v684 = vunpack.c.l.b16 %v566
        %v685 = vunpack.c.h.b16 %v566
        %v686 = vunpack.c.l.b16 %v567
        %v687 = vunpack.c.l.b16 %v568
        %v688 = vunpack.c.h.b16 %v568
        %v689 = vunpack.c.l.b16 %v569
        %v690 = vunpack.c.l.b16 %v570
        %v691 = vunpack.c.h.b16 %v570
        %v692 = vunpack.c.l.b16 %v571
        %v693 = vunpack.c.l.b16 %v572
        %v694 = vunpack.c.h.b16 %v572
        %v695 = vunpack.c.l.b16 %v573
        %v696 = vunpack.c.l.b16 %v574
        %v697 = vunpack.c.h.b16 %v574
        %v698 = vunpack.c.l.b16 %v575
        %v699 = vunpack.c.l.b16 %v576
        %v700 = vunpack.c.h.b16 %v576
        %v701 = vunpack.c.l.b16 %v577
        %v702 = vunpack.c.l.b16 %v578
        %v703 = vunpack.c.h.b16 %v578
        %v704 = vunpack.c.l.b16 %v579
        %v705 = vunpack.c.l.b16 %v580
        %v706 = vunpack.c.h.b16 %v580
        %v707 = vunpack.c.l.b16 %v581
        %v708 = vunpack.c.l.b16 %v582
        %v709 = vunpack.c.h.b16 %v582
        %v710 = vunpack.c.l.b16 %v583
        %v711 = vunpack.c.l.b16 %v584
        %v712 = vunpack.c.h.b16 %v584
        %v713 = vunpack.c.l.b16 %v585
        %v714 = vpack.c.b16 %v669, %v666
        %v715 = vpack.c.b16 %v670, %v667
        %v716 = vpack.c.b16 %v671, %v668
        %v717 = vpack.c.b16 %v675, %v672
        %v718 = vpack.c.b16 %v676, %v673
        %v719 = vpack.c.b16 %v677, %v674
        %v720 = vpack.c.b16 %v681, %v678
        %v721 = vpack.c.b16 %v682, %v679
        %v722 = vpack.c.b16 %v683, %v680
        %v723 = vpack.c.b16 %v687, %v684
        %v724 = vpack.c.b16 %v688, %v685
        %v725 = vpack.c.b16 %v689, %v686
        %v726 = vpack.c.b16 %v693, %v690
        %v727 = vpack.c.b16 %v694, %v691
        %v728 = vpack.c.b16 %v695, %v692
        %v729 = vpack.c.b16 %v699, %v696
        %v730 = vpack.c.b16 %v700, %v697
        %v731 = vpack.c.b16 %v701, %v698
        %v732 = vpack.c.b16 %v705, %v702
        %v733 = vpack.c.b16 %v706, %v703
        %v734 = vpack.c.b16 %v707, %v704
        %v735 = vpack.c.b16 %v711, %v708
        %v736 = vpack.c.b16 %v712, %v709
        %v737 = vpack.c.b16 %v713, %v710
        %762 = vmatprep.subr.bf16.mxu0 %v715
        %763 = vmatpush1.bf16.msra.mxu0 %v714
        %764 = vmatprep.subr.bf16.mxu0 %v718
        %765 = vmatpush1.bf16.msra.mxu0 %v717
        %766 = vmatprep.subr.bf16.mxu0 %v721
        %767 = vmatpush1.bf16.msra.mxu0 %v720
        %768 = vmatprep.subr.bf16.mxu0 %v724
        %769 = vmatpush1.bf16.msra.mxu0 %v723
        %770 = vmatprep.subr.bf16.mxu0 %v727
        %771 = vmatpush1.bf16.msra.mxu0 %v726
        %772 = vmatprep.subr.bf16.mxu0 %v730
        %773 = vmatpush1.bf16.msra.mxu0 %v729
        %774 = vmatprep.subr.bf16.mxu0 %v733
        %775 = vmatpush1.bf16.msra.mxu0 %v732
        %776 = vmatprep.subr.bf16.mxu0 %v736
        %777 = vmatpush1.bf16.msra.mxu0 %v735
        %778 = vmatprep.subr.bf16.mxu0 0
        %779 = vmatpush1.bf16.msra.mxu0 0
        %780 = vmatprep.subr.bf16.mxu0 0
        %781 = vmatpush1.bf16.msra.mxu0 0
        %782 = vmatprep.subr.bf16.mxu0 0
        %783 = vmatpush1.bf16.msra.mxu0 0
        %784 = vmatprep.subr.bf16.mxu0 0
        %785 = vmatpush1.bf16.msra.mxu0 0
        %786 = vmatprep.subr.bf16.mxu0 0
        %787 = vmatpush1.bf16.msra.mxu0 0
        %788 = vmatprep.subr.bf16.mxu0 0
        %789 = vmatpush1.bf16.msra.mxu0 0
        %790 = vmatprep.subr.bf16.mxu0 0
        %791 = vmatpush1.bf16.msra.mxu0 0
        %792 = vmatprep.subr.bf16.mxu0 0
        %793 = vmatpush1.bf16.msra.mxu0 0
        %794 = vmatprep.mubr.bf16.mxu0 0
        %795 = vmatmul.mubr.bf16.gmra.mrb[0].mxu0 %v618
        %v796 = vpop.f32.mrb[0].mxu0
        %v797 = vadd.f32 0.0, %v796
        %v798 = vpop.f32.mrb[0].mxu0
        %v799 = vadd.f32 0.0, %v798
        %v800 = vpop.f32.mrb[0].mxu0
        %v801 = vadd.f32 0.0, %v800
        %v802 = vpop.f32.mrb[0].mxu0
        %v803 = vadd.f32 0.0, %v802
        %804 = vmatprep.mubr.bf16.mxu0 0
        %805 = vmatmul.mubr.bf16.gmra.mrb[0].mxu0 %v619
        %v806 = vpop.f32.mrb[0].mxu0
        %v807 = vadd.f32 0.0, %v806
        %v808 = vpop.f32.mrb[0].mxu0
        %v809 = vadd.f32 0.0, %v808
        %v810 = vpop.f32.mrb[0].mxu0
        %v811 = vadd.f32 0.0, %v810
        %v812 = vpop.f32.mrb[0].mxu0
        %v813 = vadd.f32 0.0, %v812
        %814 = vmatprep.mubr.bf16.mxu0 0
        %815 = vmatmul.mubr.bf16.gmra.mrb[0].mxu0 %v620
        %v816 = vpop.f32.mrb[0].mxu0
        %v817 = vadd.f32 0.0, %v816
        %v818 = vpop.f32.mrb[0].mxu0
        %v819 = vadd.f32 0.0, %v818
        %v820 = vpop.f32.mrb[0].mxu0
        %v821 = vadd.f32 0.0, %v820
        %v822 = vpop.f32.mrb[0].mxu0
        %v823 = vadd.f32 0.0, %v822
        %824 = vmatprep.mubr.bf16.mxu0 0
        %825 = vmatmul.mubr.bf16.gmra.mrb[0].mxu0 %v621
        %v826 = vpop.f32.mrb[0].mxu0
        %v827 = vadd.f32 0.0, %v826
        %v828 = vpop.f32.mrb[0].mxu0
        %v829 = vadd.f32 0.0, %v828
        %v830 = vpop.f32.mrb[0].mxu0
        %v831 = vadd.f32 0.0, %v830
        %v832 = vpop.f32.mrb[0].mxu0
        %v833 = vadd.f32 0.0, %v832
        %834 = vmatprep.mubr.bf16.mxu0 0
        %835 = vmatmul.mubr.bf16.gmra.mrb[0].mxu0 %v622
        %v836 = vpop.f32.mrb[0].mxu0
        %v837 = vadd.f32 0.0, %v836
        %v838 = vpop.f32.mrb[0].mxu0
        %v839 = vadd.f32 0.0, %v838
        %v840 = vpop.f32.mrb[0].mxu0
        %v841 = vadd.f32 0.0, %v840
        %v842 = vpop.f32.mrb[0].mxu0
        %v843 = vadd.f32 0.0, %v842
        %844 = vmatprep.mubr.bf16.mxu0 0
        %845 = vmatmul.mubr.bf16.gmra.mrb[0].mxu0 %v623
        %v846 = vpop.f32.mrb[0].mxu0
        %v847 = vadd.f32 0.0, %v846
        %v848 = vpop.f32.mrb[0].mxu0
        %v849 = vadd.f32 0.0, %v848
        %v850 = vpop.f32.mrb[0].mxu0
        %v851 = vadd.f32 0.0, %v850
        %v852 = vpop.f32.mrb[0].mxu0
        %v853 = vadd.f32 0.0, %v852
        %854 = vmatprep.mubr.bf16.mxu0 0
        %855 = vmatmul.mubr.bf16.gmra.mrb[0].mxu0 %v624
        %v856 = vpop.f32.mrb[0].mxu0
        %v857 = vadd.f32 0.0, %v856
        %v858 = vpop.f32.mrb[0].mxu0
        %v859 = vadd.f32 0.0, %v858
        %v860 = vpop.f32.mrb[0].mxu0
        %v861 = vadd.f32 0.0, %v860
        %v862 = vpop.f32.mrb[0].mxu0
        %v863 = vadd.f32 0.0, %v862
        %864 = vmatprep.mubr.bf16.mxu0 0
        %865 = vmatmul.mubr.bf16.gmra.mrb[0].mxu0 %v625
        %v866 = vpop.f32.mrb[0].mxu0
        %v867 = vadd.f32 0.0, %v866
        %v868 = vpop.f32.mrb[0].mxu0
        %v869 = vadd.f32 0.0, %v868
        %v870 = vpop.f32.mrb[0].mxu0
        %v871 = vadd.f32 0.0, %v870
        %v872 = vpop.f32.mrb[0].mxu0
        %v873 = vadd.f32 0.0, %v872
        %874 = vdwg.mxu0
        %875 = vmatprep.subr.bf16.mxu0 0
        %876 = vmatpush1.bf16.msra.mxu0 %v716
        %877 = vmatprep.subr.bf16.mxu0 0
        %878 = vmatpush1.bf16.msra.mxu0 %v719
        %879 = vmatprep.subr.bf16.mxu0 0
        %880 = vmatpush1.bf16.msra.mxu0 %v722
        %881 = vmatprep.subr.bf16.mxu0 0
        %882 = vmatpush1.bf16.msra.mxu0 %v725
        %883 = vmatprep.subr.bf16.mxu0 0
        %884 = vmatpush1.bf16.msra.mxu0 %v728
        %885 = vmatprep.subr.bf16.mxu0 0
        %886 = vmatpush1.bf16.msra.mxu0 %v731
        %887 = vmatprep.subr.bf16.mxu0 0
        %888 = vmatpush1.bf16.msra.mxu0 %v734
        %889 = vmatprep.subr.bf16.mxu0 0
        %890 = vmatpush1.bf16.msra.mxu0 %v737
        %891 = vmatprep.subr.bf16.mxu0 0
        %892 = vmatpush1.bf16.msra.mxu0 0
        %893 = vmatprep.subr.bf16.mxu0 0
        %894 = vmatpush1.bf16.msra.mxu0 0
        %895 = vmatprep.subr.bf16.mxu0 0
        %896 = vmatpush1.bf16.msra.mxu0 0
        %897 = vmatprep.subr.bf16.mxu0 0
        %898 = vmatpush1.bf16.msra.mxu0 0
        %899 = vmatprep.subr.bf16.mxu0 0
        %900 = vmatpush1.bf16.msra.mxu0 0
        %901 = vmatprep.subr.bf16.mxu0 0
        %902 = vmatpush1.bf16.msra.mxu0 0
        %903 = vmatprep.subr.bf16.mxu0 0
        %904 = vmatpush1.bf16.msra.mxu0 0
        %905 = vmatprep.subr.bf16.mxu0 0
        %906 = vmatpush1.bf16.msra.mxu0 0
        %907 = vmatprep.mubr.bf16.mxu0 0
        %908 = vmatmul.mubr.bf16.gmra.mrb[0].mxu0 %v618
        %v909 = vpop.f32.mrb[0].mxu0
        %v910 = vadd.f32 0.0, %v909
        %v911 = vpop.f32.mrb[0].mxu0
        %v912 = vpop.f32.mrb[0].mxu0
        %v913 = vadd.f32 0.0, %v912
        %v914 = vpop.f32.mrb[0].mxu0
        %915 = vmatprep.mubr.bf16.mxu0 0
        %916 = vmatmul.mubr.bf16.gmra.mrb[0].mxu0 %v619
        %v917 = vpop.f32.mrb[0].mxu0
        %v918 = vadd.f32 0.0, %v917
        %v919 = vpop.f32.mrb[0].mxu0
        %v920 = vpop.f32.mrb[0].mxu0
        %v921 = vadd.f32 0.0, %v920
        %v922 = vpop.f32.mrb[0].mxu0
        %923 = vmatprep.mubr.bf16.mxu0 0
        %924 = vmatmul.mubr.bf16.gmra.mrb[0].mxu0 %v620
        %v925 = vpop.f32.mrb[0].mxu0
        %v926 = vadd.f32 0.0, %v925
        %v927 = vpop.f32.mrb[0].mxu0
        %v928 = vpop.f32.mrb[0].mxu0
        %v929 = vadd.f32 0.0, %v928
        %v930 = vpop.f32.mrb[0].mxu0
        %931 = vmatprep.mubr.bf16.mxu0 0
        %932 = vmatmul.mubr.bf16.gmra.mrb[0].mxu0 %v621
        %v933 = vpop.f32.mrb[0].mxu0
        %v934 = vadd.f32 0.0, %v933
        %v935 = vpop.f32.mrb[0].mxu0
        %v936 = vpop.f32.mrb[0].mxu0
        %v937 = vadd.f32 0.0, %v936
        %v938 = vpop.f32.mrb[0].mxu0
        %939 = vmatprep.mubr.bf16.mxu0 0
        %940 = vmatmul.mubr.bf16.gmra.mrb[0].mxu0 %v622
        %v941 = vpop.f32.mrb[0].mxu0
        %v942 = vadd.f32 0.0, %v941
        %v943 = vpop.f32.mrb[0].mxu0
        %v944 = vpop.f32.mrb[0].mxu0
        %v945 = vadd.f32 0.0, %v944
        %v946 = vpop.f32.mrb[0].mxu0
        %947 = vmatprep.mubr.bf16.mxu0 0
        %948 = vmatmul.mubr.bf16.gmra.mrb[0].mxu0 %v623
        %v949 = vpop.f32.mrb[0].mxu0
        %v950 = vadd.f32 0.0, %v949
        %v951 = vpop.f32.mrb[0].mxu0
        %v952 = vpop.f32.mrb[0].mxu0
        %v953 = vadd.f32 0.0, %v952
        %v954 = vpop.f32.mrb[0].mxu0
        %955 = vmatprep.mubr.bf16.mxu0 0
        %956 = vmatmul.mubr.bf16.gmra.mrb[0].mxu0 %v624
        %v957 = vpop.f32.mrb[0].mxu0
        %v958 = vadd.f32 0.0, %v957
        %v959 = vpop.f32.mrb[0].mxu0
        %v960 = vpop.f32.mrb[0].mxu0
        %v961 = vadd.f32 0.0, %v960
        %v962 = vpop.f32.mrb[0].mxu0
        %963 = vmatprep.mubr.bf16.mxu0 0
        %964 = vmatmul.mubr.bf16.gmra.mrb[0].mxu0 %v625
        %v965 = vpop.f32.mrb[0].mxu0
        %v966 = vadd.f32 0.0, %v965
        %v967 = vpop.f32.mrb[0].mxu0
        %v968 = vpop.f32.mrb[0].mxu0
        %v969 = vadd.f32 0.0, %v968
        %v970 = vpop.f32.mrb[0].mxu0
        %971 = vdwg.mxu0
        %v972 = vld [vmem:[%s2] sm:$0x1]
        %v974 = vlaneseq
        %v975 = vshrl.u32 %v974, 7
        %v976 = vsub.s32 0, %v975
        %v977 = vrot.slane %v972, %v976
        %v979 = vadd.f32 %v799, %v977
        %v980 = vadd.f32 %v803, %v977
        %v981 = vadd.f32 %v809, %v977
        %v982 = vadd.f32 %v813, %v977
        %v983 = vadd.f32 %v819, %v977
        %v984 = vadd.f32 %v823, %v977
        %v985 = vadd.f32 %v829, %v977
        %v986 = vadd.f32 %v833, %v977
        %v987 = vadd.f32 %v839, %v977
        %v988 = vadd.f32 %v843, %v977
        %v989 = vadd.f32 %v849, %v977
        %v990 = vadd.f32 %v853, %v977
        %v991 = vadd.f32 %v859, %v977
        %v992 = vadd.f32 %v863, %v977
        %v993 = vadd.f32 %v869, %v977
        %v994 = vadd.f32 %v873, %v977
        %v995 = vmul.f32 %v871, %v490
        %v996 = vmul.f32 %v797, %v491
        %v997 = vmul.f32 %v801, %v492
        %v998 = vmul.f32 %v807, %v493
        %v999 = vmul.f32 %v811, %v494
        %v1000 = vmul.f32 %v817, %v495
        %v1001 = vmul.f32 %v821, %v496
        %v1002 = vmul.f32 %v827, %v497
        %v1003 = vmul.f32 %v831, %v498
        %v1004 = vmul.f32 %v837, %v499
        %v1005 = vmul.f32 %v841, %v500
        %v1006 = vmul.f32 %v847, %v501
        %v1007 = vmul.f32 %v851, %v502
        %v1008 = vmul.f32 %v857, %v503
        %v1009 = vmul.f32 %v861, %v504
        %v1010 = vmul.f32 %v867, %v505
        %v1011 = vadd.f32 %v979, %v995
        %v1012 = vadd.f32 %v980, %v996
        %v1013 = vadd.f32 %v981, %v997
        %v1014 = vadd.f32 %v982, %v998
        %v1015 = vadd.f32 %v983, %v999
        %v1016 = vadd.f32 %v984, %v1000
        %v1017 = vadd.f32 %v985, %v1001
        %v1018 = vadd.f32 %v986, %v1002
        %v1019 = vadd.f32 %v987, %v1003
        %v1020 = vadd.f32 %v988, %v1004
        %v1021 = vadd.f32 %v989, %v1005
        %v1022 = vadd.f32 %v990, %v1006
        %v1023 = vadd.f32 %v991, %v1007
        %v1024 = vadd.f32 %v992, %v1008
        %v1025 = vadd.f32 %v993, %v1009
        %v1026 = vadd.f32 %v994, %v1010
        %v1027 = vmul.f32 %v913, %v538
        %v1028 = vmul.f32 %v918, %v539
        %v1029 = vmul.f32 %v921, %v540
        %v1030 = vmul.f32 %v926, %v541
        %v1031 = vmul.f32 %v929, %v542
        %v1032 = vmul.f32 %v934, %v543
        %v1033 = vmul.f32 %v937, %v544
        %v1034 = vmul.f32 %v942, %v545
        %v1035 = vmul.f32 %v945, %v546
        %v1036 = vmul.f32 %v950, %v547
        %v1037 = vmul.f32 %v953, %v548
        %v1038 = vmul.f32 %v958, %v549
        %v1039 = vmul.f32 %v961, %v550
        %v1040 = vmul.f32 %v966, %v551
        %v1041 = vmul.f32 %v969, %v552
        %v1042 = vmul.f32 %v910, %v553
        %v1043 = vadd.f32 %v1011, %v1027
        %v1044 = vadd.f32 %v1012, %v1028
        %v1045 = vadd.f32 %v1013, %v1029
        %v1046 = vadd.f32 %v1014, %v1030
        %v1047 = vadd.f32 %v1015, %v1031
        %v1048 = vadd.f32 %v1016, %v1032
        %v1049 = vadd.f32 %v1017, %v1033
        %v1050 = vadd.f32 %v1018, %v1034
        %v1051 = vadd.f32 %v1019, %v1035
        %v1052 = vadd.f32 %v1020, %v1036
        %v1053 = vadd.f32 %v1021, %v1037
        %v1054 = vadd.f32 %v1022, %v1038
        %v1055 = vadd.f32 %v1023, %v1039
        %v1056 = vadd.f32 %v1024, %v1040
        %v1057 = vadd.f32 %v1025, %v1041
        %v1058 = vadd.f32 %v1026, %v1042
        %v1059 = vmax.f32 %v1043, 0.0
        %v1060 = vmax.f32 %v1044, 0.0
        %v1061 = vmax.f32 %v1045, 0.0
        %v1062 = vmax.f32 %v1046, 0.0
        %v1063 = vmax.f32 %v1047, 0.0
        %v1064 = vmax.f32 %v1048, 0.0
        %v1065 = vmax.f32 %v1049, 0.0
        %v1066 = vmax.f32 %v1050, 0.0
        %v1067 = vmax.f32 %v1051, 0.0
        %v1068 = vmax.f32 %v1052, 0.0
        %v1069 = vmax.f32 %v1053, 0.0
        %v1070 = vmax.f32 %v1054, 0.0
        %v1071 = vmax.f32 %v1055, 0.0
        %v1072 = vmax.f32 %v1056, 0.0
        %v1073 = vmax.f32 %v1057, 0.0
        %v1074 = vmax.f32 %v1058, 0.0
        %v1075 = vmax.f32 %v1059, %v1063
        %v1076 = vmax.f32 %v1060, %v1064
        %v1077 = vmax.f32 %v1061, %v1065
        %v1078 = vmax.f32 %v1062, %v1066
        %v1079 = vmax.f32 %v1075, %v1067
        %v1080 = vmax.f32 %v1076, %v1068
        %v1081 = vmax.f32 %v1077, %v1069
        %v1082 = vmax.f32 %v1078, %v1070
        %v1083 = vmax.f32 %v1079, %v1071
        %v1084 = vmax.f32 %v1080, %v1072
        %v1085 = vmax.f32 %v1081, %v1073
        %v1086 = vmax.f32 %v1082, %v1074
        %v1087 = vmax.f32 %v1083, %v1084
        %v1088 = vmax.f32 %v1085, %v1086
        %v1089 = vmax.f32 %v1087, %v1088
        %v1090 = vpack.c.bf16 %v1060, %v1059
        %v1091 = vpack.c.bf16 %v1062, %v1061
        %v1092 = vpack.c.bf16 %v1064, %v1063
        %v1093 = vpack.c.bf16 %v1066, %v1065
        %v1094 = vpack.c.bf16 %v1068, %v1067
        %v1095 = vpack.c.bf16 %v1070, %v1069
        %v1096 = vpack.c.bf16 %v1072, %v1071
        %v1097 = vpack.c.bf16 %v1074, %v1073
        %1098 = vst [vmem:[%s407] sm:$0xff] %v1089
        %v1099 = vld [vmem:[#allocation7] sm:$0xff]
        %v1100 = vld [vmem:[#allocation7 + $0x8] sm:$0xf]
        %v1101 = vld [vmem:[#allocation7 + $0xc] sm:$0xff]
        %v1102 = vld [vmem:[#allocation7 + $0x14] sm:$0xf]
        %v1103 = vld [vmem:[#allocation7 + $0x18] sm:$0xff]
        %v1104 = vld [vmem:[#allocation7 + $0x20] sm:$0xf]
        %v1105 = vld [vmem:[#allocation7 + $0x24] sm:$0xff]
        %v1106 = vld [vmem:[#allocation7 + $0x2c] sm:$0xf]
        %v1107 = vld [vmem:[#allocation7 + $0x30] sm:$0xff]
        %v1108 = vld [vmem:[#allocation7 + $0x38] sm:$0xf]
        %v1109 = vld [vmem:[#allocation7 + $0x3c] sm:$0xff]
        %v1110 = vld [vmem:[#allocation7 + $0x44] sm:$0xf]
        %v1111 = vld [vmem:[#allocation7 + $0x48] sm:$0xff]
        %v1112 = vld [vmem:[#allocation7 + $0x50] sm:$0xf]
        %v1113 = vld [vmem:[#allocation7 + $0x54] sm:$0xff]
        %v1114 = vld [vmem:[#allocation7 + $0x5c] sm:$0xf]
        %v1115 = vld [vmem:[#allocation7 + $0x60] sm:$0xff]
        %v1116 = vld [vmem:[#allocation7 + $0x68] sm:$0xf]
        %v1117 = vld [vmem:[#allocation7 + $0x6c] sm:$0xff]
        %v1118 = vld [vmem:[#allocation7 + $0x74] sm:$0xf]
        %v1119 = vld [vmem:[#allocation7 + $0x78] sm:$0xff]
        %v1120 = vld [vmem:[#allocation7 + $0x80] sm:$0xf]
        %v1121 = vld [vmem:[#allocation7 + $0x84] sm:$0xff]
        %v1122 = vld [vmem:[#allocation7 + $0x8c] sm:$0xf]
        %v1123 = vld [vmem:[#allocation7 + $0x90] sm:$0xff]
        %v1124 = vld [vmem:[#allocation7 + $0x98] sm:$0xf]
        %v1125 = vld [vmem:[#allocation7 + $0x9c] sm:$0xff]
        %v1126 = vld [vmem:[#allocation7 + $0xa4] sm:$0xf]
        %v1127 = vld [vmem:[#allocation7 + $0xa8] sm:$0xff]
        %v1128 = vld [vmem:[#allocation7 + $0xb0] sm:$0xf]
        %v1129 = vld [vmem:[#allocation7 + $0xb4] sm:$0xff]
        %v1130 = vld [vmem:[#allocation7 + $0xbc] sm:$0xf]
        %v1163 = vunpack.c.l.b16 %v1099
        %v1164 = vunpack.c.h.b16 %v1099
        %v1165 = vunpack.c.l.b16 %v1100
        %v1166 = vunpack.c.l.b16 %v1101
        %v1167 = vunpack.c.h.b16 %v1101
        %v1168 = vunpack.c.l.b16 %v1102
        %v1169 = vunpack.c.l.b16 %v1103
        %v1170 = vunpack.c.h.b16 %v1103
        %v1171 = vunpack.c.l.b16 %v1104
        %v1172 = vunpack.c.l.b16 %v1105
        %v1173 = vunpack.c.h.b16 %v1105
        %v1174 = vunpack.c.l.b16 %v1106
        %v1175 = vunpack.c.l.b16 %v1107
        %v1176 = vunpack.c.h.b16 %v1107
        %v1177 = vunpack.c.l.b16 %v1108
        %v1178 = vunpack.c.l.b16 %v1109
        %v1179 = vunpack.c.h.b16 %v1109
        %v1180 = vunpack.c.l.b16 %v1110
        %v1181 = vunpack.c.l.b16 %v1111
        %v1182 = vunpack.c.h.b16 %v1111
        %v1183 = vunpack.c.l.b16 %v1112
        %v1184 = vunpack.c.l.b16 %v1113
        %v1185 = vunpack.c.h.b16 %v1113
        %v1186 = vunpack.c.l.b16 %v1114
        %v1187 = vunpack.c.l.b16 %v1115
        %v1188 = vunpack.c.h.b16 %v1115
        %v1189 = vunpack.c.l.b16 %v1116
        %v1190 = vunpack.c.l.b16 %v1117
        %v1191 = vunpack.c.h.b16 %v1117
        %v1192 = vunpack.c.l.b16 %v1118
        %v1193 = vunpack.c.l.b16 %v1119
        %v1194 = vunpack.c.h.b16 %v1119
        %v1195 = vunpack.c.l.b16 %v1120
        %v1196 = vunpack.c.l.b16 %v1121
        %v1197 = vunpack.c.h.b16 %v1121
        %v1198 = vunpack.c.l.b16 %v1122
        %v1199 = vunpack.c.l.b16 %v1123
        %v1200 = vunpack.c.h.b16 %v1123
        %v1201 = vunpack.c.l.b16 %v1124
        %v1202 = vunpack.c.l.b16 %v1125
        %v1203 = vunpack.c.h.b16 %v1125
        %v1204 = vunpack.c.l.b16 %v1126
        %v1205 = vunpack.c.l.b16 %v1127
        %v1206 = vunpack.c.h.b16 %v1127
        %v1207 = vunpack.c.l.b16 %v1128
        %v1208 = vunpack.c.l.b16 %v1129
        %v1209 = vunpack.c.h.b16 %v1129
        %v1210 = vunpack.c.l.b16 %v1130
        %v1211 = vpack.c.b16 %v1166, %v1163
        %v1212 = vpack.c.b16 %v1167, %v1164
        %v1213 = vpack.c.b16 %v1168, %v1165
        %v1214 = vpack.c.b16 %v1172, %v1169
        %v1215 = vpack.c.b16 %v1173, %v1170
        %v1216 = vpack.c.b16 %v1174, %v1171
        %v1217 = vpack.c.b16 %v1178, %v1175
        %v1218 = vpack.c.b16 %v1179, %v1176
        %v1219 = vpack.c.b16 %v1180, %v1177
        %v1220 = vpack.c.b16 %v1184, %v1181
        %v1221 = vpack.c.b16 %v1185, %v1182
        %v1222 = vpack.c.b16 %v1186, %v1183
        %v1223 = vpack.c.b16 %v1190, %v1187
        %v1224 = vpack.c.b16 %v1191, %v1188
        %v1225 = vpack.c.b16 %v1192, %v1189
        %v1226 = vpack.c.b16 %v1196, %v1193
        %v1227 = vpack.c.b16 %v1197, %v1194
        %v1228 = vpack.c.b16 %v1198, %v1195
        %v1229 = vpack.c.b16 %v1202, %v1199
        %v1230 = vpack.c.b16 %v1203, %v1200
        %v1231 = vpack.c.b16 %v1204, %v1201
        %v1232 = vpack.c.b16 %v1208, %v1205
        %v1233 = vpack.c.b16 %v1209, %v1206
        %v1234 = vpack.c.b16 %v1210, %v1207
        %1259 = vmatprep.subr.bf16.mxu0 %v1212
        %1260 = vmatpush1.bf16.msra.mxu0 %v1211
        %1261 = vmatprep.subr.bf16.mxu0 %v1215
        %1262 = vmatpush1.bf16.msra.mxu0 %v1214
        %1263 = vmatprep.subr.bf16.mxu0 %v1218
        %1264 = vmatpush1.bf16.msra.mxu0 %v1217
        %1265 = vmatprep.subr.bf16.mxu0 %v1221
        %1266 = vmatpush1.bf16.msra.mxu0 %v1220
        %1267 = vmatprep.subr.bf16.mxu0 %v1224
        %1268 = vmatpush1.bf16.msra.mxu0 %v1223
        %1269 = vmatprep.subr.bf16.mxu0 %v1227
        %1270 = vmatpush1.bf16.msra.mxu0 %v1226
        %1271 = vmatprep.subr.bf16.mxu0 %v1230
        %1272 = vmatpush1.bf16.msra.mxu0 %v1229
        %1273 = vmatprep.subr.bf16.mxu0 %v1233
        %1274 = vmatpush1.bf16.msra.mxu0 %v1232
        %1275 = vmatprep.subr.bf16.mxu0 0
        %1276 = vmatpush1.bf16.msra.mxu0 0
        %1277 = vmatprep.subr.bf16.mxu0 0
        %1278 = vmatpush1.bf16.msra.mxu0 0
        %1279 = vmatprep.subr.bf16.mxu0 0
        %1280 = vmatpush1.bf16.msra.mxu0 0
        %1281 = vmatprep.subr.bf16.mxu0 0
        %1282 = vmatpush1.bf16.msra.mxu0 0
        %1283 = vmatprep.subr.bf16.mxu0 0
        %1284 = vmatpush1.bf16.msra.mxu0 0
        %1285 = vmatprep.subr.bf16.mxu0 0
        %1286 = vmatpush1.bf16.msra.mxu0 0
        %1287 = vmatprep.subr.bf16.mxu0 0
        %1288 = vmatpush1.bf16.msra.mxu0 0
        %1289 = vmatprep.subr.bf16.mxu0 0
        %1290 = vmatpush1.bf16.msra.mxu0 0
        %1291 = vmatprep.mubr.bf16.mxu0 0
        %1292 = vmatmul.mubr.bf16.gmra.mrb[0].mxu0 %v1090
        %v1293 = vpop.f32.mrb[0].mxu0
        %v1294 = vadd.f32 0.0, %v1293
        %v1295 = vpop.f32.mrb[0].mxu0
        %v1296 = vadd.f32 0.0, %v1295
        %v1297 = vpop.f32.mrb[0].mxu0
        %v1298 = vadd.f32 0.0, %v1297
        %v1299 = vpop.f32.mrb[0].mxu0
        %v1300 = vadd.f32 0.0, %v1299
        %1301 = vmatprep.mubr.bf16.mxu0 0
        %1302 = vmatmul.mubr.bf16.gmra.mrb[0].mxu0 %v1091
        %v1303 = vpop.f32.mrb[0].mxu0
        %v1304 = vadd.f32 0.0, %v1303
        %v1305 = vpop.f32.mrb[0].mxu0
        %v1306 = vadd.f32 0.0, %v1305
        %v1307 = vpop.f32.mrb[0].mxu0
        %v1308 = vadd.f32 0.0, %v1307
        %v1309 = vpop.f32.mrb[0].mxu0
        %v1310 = vadd.f32 0.0, %v1309
        %1311 = vmatprep.mubr.bf16.mxu0 0
        %1312 = vmatmul.mubr.bf16.gmra.mrb[0].mxu0 %v1092
        %v1313 = vpop.f32.mrb[0].mxu0
        %v1314 = vadd.f32 0.0, %v1313
        %v1315 = vpop.f32.mrb[0].mxu0
        %v1316 = vadd.f32 0.0, %v1315
        %v1317 = vpop.f32.mrb[0].mxu0
        %v1318 = vadd.f32 0.0, %v1317
        %v1319 = vpop.f32.mrb[0].mxu0
        %v1320 = vadd.f32 0.0, %v1319
        %1321 = vmatprep.mubr.bf16.mxu0 0
        %1322 = vmatmul.mubr.bf16.gmra.mrb[0].mxu0 %v1093
        %v1323 = vpop.f32.mrb[0].mxu0
        %v1324 = vadd.f32 0.0, %v1323
        %v1325 = vpop.f32.mrb[0].mxu0
        %v1326 = vadd.f32 0.0, %v1325
        %v1327 = vpop.f32.mrb[0].mxu0
        %v1328 = vadd.f32 0.0, %v1327
        %v1329 = vpop.f32.mrb[0].mxu0
        %v1330 = vadd.f32 0.0, %v1329
        %1331 = vmatprep.mubr.bf16.mxu0 0
        %1332 = vmatmul.mubr.bf16.gmra.mrb[0].mxu0 %v1094
        %v1333 = vpop.f32.mrb[0].mxu0
        %v1334 = vadd.f32 0.0, %v1333
        %v1335 = vpop.f32.mrb[0].mxu0
        %v1336 = vadd.f32 0.0, %v1335
        %v1337 = vpop.f32.mrb[0].mxu0
        %v1338 = vadd.f32 0.0, %v1337
        %v1339 = vpop.f32.mrb[0].mxu0
        %v1340 = vadd.f32 0.0, %v1339
        %1341 = vmatprep.mubr.bf16.mxu0 0
        %1342 = vmatmul.mubr.bf16.gmra.mrb[0].mxu0 %v1095
        %v1343 = vpop.f32.mrb[0].mxu0
        %v1344 = vadd.f32 0.0, %v1343
        %v1345 = vpop.f32.mrb[0].mxu0
        %v1346 = vadd.f32 0.0, %v1345
        %v1347 = vpop.f32.mrb[0].mxu0
        %v1348 = vadd.f32 0.0, %v1347
        %v1349 = vpop.f32.mrb[0].mxu0
        %v1350 = vadd.f32 0.0, %v1349
        %1351 = vmatprep.mubr.bf16.mxu0 0
        %1352 = vmatmul.mubr.bf16.gmra.mrb[0].mxu0 %v1096
        %v1353 = vpop.f32.mrb[0].mxu0
        %v1354 = vadd.f32 0.0, %v1353
        %v1355 = vpop.f32.mrb[0].mxu0
        %v1356 = vadd.f32 0.0, %v1355
        %v1357 = vpop.f32.mrb[0].mxu0
        %v1358 = vadd.f32 0.0, %v1357
        %v1359 = vpop.f32.mrb[0].mxu0
        %v1360 = vadd.f32 0.0, %v1359
        %1361 = vmatprep.mubr.bf16.mxu0 0
        %1362 = vmatmul.mubr.bf16.gmra.mrb[0].mxu0 %v1097
        %v1363 = vpop.f32.mrb[0].mxu0
        %v1364 = vadd.f32 0.0, %v1363
        %v1365 = vpop.f32.mrb[0].mxu0
        %v1366 = vadd.f32 0.0, %v1365
        %v1367 = vpop.f32.mrb[0].mxu0
        %v1368 = vadd.f32 0.0, %v1367
        %v1369 = vpop.f32.mrb[0].mxu0
        %v1370 = vadd.f32 0.0, %v1369
        %1371 = vdwg.mxu0
        %1372 = vmatprep.subr.bf16.mxu0 0
        %1373 = vmatpush1.bf16.msra.mxu0 %v1213
        %1374 = vmatprep.subr.bf16.mxu0 0
        %1375 = vmatpush1.bf16.msra.mxu0 %v1216
        %1376 = vmatprep.subr.bf16.mxu0 0
        %1377 = vmatpush1.bf16.msra.mxu0 %v1219
        %1378 = vmatprep.subr.bf16.mxu0 0
        %1379 = vmatpush1.bf16.msra.mxu0 %v1222
        %1380 = vmatprep.subr.bf16.mxu0 0
        %1381 = vmatpush1.bf16.msra.mxu0 %v1225
        %1382 = vmatprep.subr.bf16.mxu0 0
        %1383 = vmatpush1.bf16.msra.mxu0 %v1228
        %1384 = vmatprep.subr.bf16.mxu0 0
        %1385 = vmatpush1.bf16.msra.mxu0 %v1231
        %1386 = vmatprep.subr.bf16.mxu0 0
        %1387 = vmatpush1.bf16.msra.mxu0 %v1234
        %1388 = vmatprep.subr.bf16.mxu0 0
        %1389 = vmatpush1.bf16.msra.mxu0 0
        %1390 = vmatprep.subr.bf16.mxu0 0
        %1391 = vmatpush1.bf16.msra.mxu0 0
        %1392 = vmatprep.subr.bf16.mxu0 0
        %1393 = vmatpush1.bf16.msra.mxu0 0
        %1394 = vmatprep.subr.bf16.mxu0 0
        %1395 = vmatpush1.bf16.msra.mxu0 0
        %1396 = vmatprep.subr.bf16.mxu0 0
        %1397 = vmatpush1.bf16.msra.mxu0 0
        %1398 = vmatprep.subr.bf16.mxu0 0
        %1399 = vmatpush1.bf16.msra.mxu0 0
        %1400 = vmatprep.subr.bf16.mxu0 0
        %1401 = vmatpush1.bf16.msra.mxu0 0
        %1402 = vmatprep.subr.bf16.mxu0 0
        %1403 = vmatpush1.bf16.msra.mxu0 0
        %1404 = vmatprep.mubr.bf16.mxu0 0
        %1405 = vmatmul.mubr.bf16.gmra.mrb[0].mxu0 %v1090
        %v1406 = vpop.f32.mrb[0].mxu0
        %v1407 = vadd.f32 0.0, %v1406
        %v1408 = vpop.f32.mrb[0].mxu0
        %v1409 = vpop.f32.mrb[0].mxu0
        %v1410 = vadd.f32 0.0, %v1409
        %v1411 = vpop.f32.mrb[0].mxu0
        %1412 = vmatprep.mubr.bf16.mxu0 0
        %1413 = vmatmul.mubr.bf16.gmra.mrb[0].mxu0 %v1091
        %v1414 = vpop.f32.mrb[0].mxu0
        %v1415 = vadd.f32 0.0, %v1414
        %v1416 = vpop.f32.mrb[0].mxu0
        %v1417 = vpop.f32.mrb[0].mxu0
        %v1418 = vadd.f32 0.0, %v1417
        %v1419 = vpop.f32.mrb[0].mxu0
        %1420 = vmatprep.mubr.bf16.mxu0 0
        %1421 = vmatmul.mubr.bf16.gmra.mrb[0].mxu0 %v1092
        %v1422 = vpop.f32.mrb[0].mxu0
        %v1423 = vadd.f32 0.0, %v1422
        %v1424 = vpop.f32.mrb[0].mxu0
        %v1425 = vpop.f32.mrb[0].mxu0
        %v1426 = vadd.f32 0.0, %v1425
        %v1427 = vpop.f32.mrb[0].mxu0
        %1428 = vmatprep.mubr.bf16.mxu0 0
        %1429 = vmatmul.mubr.bf16.gmra.mrb[0].mxu0 %v1093
        %v1430 = vpop.f32.mrb[0].mxu0
        %v1431 = vadd.f32 0.0, %v1430
        %v1432 = vpop.f32.mrb[0].mxu0
        %v1433 = vpop.f32.mrb[0].mxu0
        %v1434 = vadd.f32 0.0, %v1433
        %v1435 = vpop.f32.mrb[0].mxu0
        %1436 = vmatprep.mubr.bf16.mxu0 0
        %1437 = vmatmul.mubr.bf16.gmra.mrb[0].mxu0 %v1094
        %v1438 = vpop.f32.mrb[0].mxu0
        %v1439 = vadd.f32 0.0, %v1438
        %v1440 = vpop.f32.mrb[0].mxu0
        %v1441 = vpop.f32.mrb[0].mxu0
        %v1442 = vadd.f32 0.0, %v1441
        %v1443 = vpop.f32.mrb[0].mxu0
        %1444 = vmatprep.mubr.bf16.mxu0 0
        %1445 = vmatmul.mubr.bf16.gmra.mrb[0].mxu0 %v1095
        %v1446 = vpop.f32.mrb[0].mxu0
        %v1447 = vadd.f32 0.0, %v1446
        %v1448 = vpop.f32.mrb[0].mxu0
        %v1449 = vpop.f32.mrb[0].mxu0
        %v1450 = vadd.f32 0.0, %v1449
        %v1451 = vpop.f32.mrb[0].mxu0
        %1452 = vmatprep.mubr.bf16.mxu0 0
        %1453 = vmatmul.mubr.bf16.gmra.mrb[0].mxu0 %v1096
        %v1454 = vpop.f32.mrb[0].mxu0
        %v1455 = vadd.f32 0.0, %v1454
        %v1456 = vpop.f32.mrb[0].mxu0
        %v1457 = vpop.f32.mrb[0].mxu0
        %v1458 = vadd.f32 0.0, %v1457
        %v1459 = vpop.f32.mrb[0].mxu0
        %1460 = vmatprep.mubr.bf16.mxu0 0
        %1461 = vmatmul.mubr.bf16.gmra.mrb[0].mxu0 %v1097
        %v1462 = vpop.f32.mrb[0].mxu0
        %v1463 = vadd.f32 0.0, %v1462
        %v1464 = vpop.f32.mrb[0].mxu0
        %v1465 = vpop.f32.mrb[0].mxu0
        %v1466 = vadd.f32 0.0, %v1465
        %v1467 = vpop.f32.mrb[0].mxu0
        %1468 = vdwg.mxu0
        %v1469 = vld [vmem:[%s4] sm:$0x1]
        %v1471 = vlaneseq
        %v1472 = vshrl.u32 %v1471, 7
        %v1473 = vsub.s32 0, %v1472
        %v1474 = vrot.slane %v1469, %v1473
        %v1476 = vadd.f32 %v1296, %v1474
        %v1477 = vadd.f32 %v1300, %v1474
        %v1478 = vadd.f32 %v1306, %v1474
        %v1479 = vadd.f32 %v1310, %v1474
        %v1480 = vadd.f32 %v1316, %v1474
        %v1481 = vadd.f32 %v1320, %v1474
        %v1482 = vadd.f32 %v1326, %v1474
        %v1483 = vadd.f32 %v1330, %v1474
        %v1484 = vadd.f32 %v1336, %v1474
        %v1485 = vadd.f32 %v1340, %v1474
        %v1486 = vadd.f32 %v1346, %v1474
        %v1487 = vadd.f32 %v1350, %v1474
        %v1488 = vadd.f32 %v1356, %v1474
        %v1489 = vadd.f32 %v1360, %v1474
        %v1490 = vadd.f32 %v1366, %v1474
        %v1491 = vadd.f32 %v1370, %v1474
        %v1492 = vmul.f32 %v1368, %v490
        %v1493 = vmul.f32 %v1294, %v491
        %v1494 = vmul.f32 %v1298, %v492
        %v1495 = vmul.f32 %v1304, %v493
        %v1496 = vmul.f32 %v1308, %v494
        %v1497 = vmul.f32 %v1314, %v495
        %v1498 = vmul.f32 %v1318, %v496
        %v1499 = vmul.f32 %v1324, %v497
        %v1500 = vmul.f32 %v1328, %v498
        %v1501 = vmul.f32 %v1334, %v499
        %v1502 = vmul.f32 %v1338, %v500
        %v1503 = vmul.f32 %v1344, %v501
        %v1504 = vmul.f32 %v1348, %v502
        %v1505 = vmul.f32 %v1354, %v503
        %v1506 = vmul.f32 %v1358, %v504
        %v1507 = vmul.f32 %v1364, %v505
        %v1508 = vadd.f32 %v1476, %v1492
        %v1509 = vadd.f32 %v1477, %v1493
        %v1510 = vadd.f32 %v1478, %v1494
        %v1511 = vadd.f32 %v1479, %v1495
        %v1512 = vadd.f32 %v1480, %v1496
        %v1513 = vadd.f32 %v1481, %v1497
        %v1514 = vadd.f32 %v1482, %v1498
        %v1515 = vadd.f32 %v1483, %v1499
        %v1516 = vadd.f32 %v1484, %v1500
        %v1517 = vadd.f32 %v1485, %v1501
        %v1518 = vadd.f32 %v1486, %v1502
        %v1519 = vadd.f32 %v1487, %v1503
        %v1520 = vadd.f32 %v1488, %v1504
        %v1521 = vadd.f32 %v1489, %v1505
        %v1522 = vadd.f32 %v1490, %v1506
        %v1523 = vadd.f32 %v1491, %v1507
        %v1524 = vmul.f32 %v1410, %v538
        %v1525 = vmul.f32 %v1415, %v539
        %v1526 = vmul.f32 %v1418, %v540
        %v1527 = vmul.f32 %v1423, %v541
        %v1528 = vmul.f32 %v1426, %v542
        %v1529 = vmul.f32 %v1431, %v543
        %v1530 = vmul.f32 %v1434, %v544
        %v1531 = vmul.f32 %v1439, %v545
        %v1532 = vmul.f32 %v1442, %v546
        %v1533 = vmul.f32 %v1447, %v547
        %v1534 = vmul.f32 %v1450, %v548
        %v1535 = vmul.f32 %v1455, %v549
        %v1536 = vmul.f32 %v1458, %v550
        %v1537 = vmul.f32 %v1463, %v551
        %v1538 = vmul.f32 %v1466, %v552
        %v1539 = vmul.f32 %v1407, %v553
        %v1540 = vadd.f32 %v1508, %v1524
        %v1541 = vadd.f32 %v1509, %v1525
        %v1542 = vadd.f32 %v1510, %v1526
        %v1543 = vadd.f32 %v1511, %v1527
        %v1544 = vadd.f32 %v1512, %v1528
        %v1545 = vadd.f32 %v1513, %v1529
        %v1546 = vadd.f32 %v1514, %v1530
        %v1547 = vadd.f32 %v1515, %v1531
        %v1548 = vadd.f32 %v1516, %v1532
        %v1549 = vadd.f32 %v1517, %v1533
        %v1550 = vadd.f32 %v1518, %v1534
        %v1551 = vadd.f32 %v1519, %v1535
        %v1552 = vadd.f32 %v1520, %v1536
        %v1553 = vadd.f32 %v1521, %v1537
        %v1554 = vadd.f32 %v1522, %v1538
        %v1555 = vadd.f32 %v1523, %v1539
        %v1556 = vmax.f32 %v1540, 0.0
        %v1557 = vmax.f32 %v1541, 0.0
        %v1558 = vmax.f32 %v1542, 0.0
        %v1559 = vmax.f32 %v1543, 0.0
        %v1560 = vmax.f32 %v1544, 0.0
        %v1561 = vmax.f32 %v1545, 0.0
        %v1562 = vmax.f32 %v1546, 0.0
        %v1563 = vmax.f32 %v1547, 0.0
        %v1564 = vmax.f32 %v1548, 0.0
        %v1565 = vmax.f32 %v1549, 0.0
        %v1566 = vmax.f32 %v1550, 0.0
        %v1567 = vmax.f32 %v1551, 0.0
        %v1568 = vmax.f32 %v1552, 0.0
        %v1569 = vmax.f32 %v1553, 0.0
        %v1570 = vmax.f32 %v1554, 0.0
        %v1571 = vmax.f32 %v1555, 0.0
        %v1572 = vmax.f32 %v1556, %v1560
        %v1573 = vmax.f32 %v1557, %v1561
        %v1574 = vmax.f32 %v1558, %v1562
        %v1575 = vmax.f32 %v1559, %v1563
        %v1576 = vmax.f32 %v1572, %v1564
        %v1577 = vmax.f32 %v1573, %v1565
        %v1578 = vmax.f32 %v1574, %v1566
        %v1579 = vmax.f32 %v1575, %v1567
        %v1580 = vmax.f32 %v1576, %v1568
        %v1581 = vmax.f32 %v1577, %v1569
        %v1582 = vmax.f32 %v1578, %v1570
        %v1583 = vmax.f32 %v1579, %v1571
        %v1584 = vmax.f32 %v1580, %v1581
        %v1585 = vmax.f32 %v1582, %v1583
        %v1586 = vmax.f32 %v1584, %v1585
        %v1587 = vpack.c.bf16 %v1557, %v1556
        %v1588 = vpack.c.bf16 %v1559, %v1558
        %v1589 = vpack.c.bf16 %v1561, %v1560
        %v1590 = vpack.c.bf16 %v1563, %v1562
        %v1591 = vpack.c.bf16 %v1565, %v1564
        %v1592 = vpack.c.bf16 %v1567, %v1566
        %v1593 = vpack.c.bf16 %v1569, %v1568
        %v1594 = vpack.c.bf16 %v1571, %v1570
        %1595 = vst [vmem:[%s407 + $0x8] sm:$0xff] %v1586
        %v1596 = vld [vmem:[#allocation8] sm:$0xff]
        %v1597 = vld [vmem:[#allocation8 + $0x8] sm:$0xf]
        %v1598 = vld [vmem:[#allocation8 + $0xc] sm:$0xff]
        %v1599 = vld [vmem:[#allocation8 + $0x14] sm:$0xf]
        %v1600 = vld [vmem:[#allocation8 + $0x18] sm:$0xff]
        %v1601 = vld [vmem:[#allocation8 + $0x20] sm:$0xf]
        %v1602 = vld [vmem:[#allocation8 + $0x24] sm:$0xff]
        %v1603 = vld [vmem:[#allocation8 + $0x2c] sm:$0xf]
        %v1604 = vld [vmem:[#allocation8 + $0x30] sm:$0xff]
        %v1605 = vld [vmem:[#allocation8 + $0x38] sm:$0xf]
        %v1606 = vld [vmem:[#allocation8 + $0x3c] sm:$0xff]
        %v1607 = vld [vmem:[#allocation8 + $0x44] sm:$0xf]
        %v1608 = vld [vmem:[#allocation8 + $0x48] sm:$0xff]
        %v1609 = vld [vmem:[#allocation8 + $0x50] sm:$0xf]
        %v1610 = vld [vmem:[#allocation8 + $0x54] sm:$0xff]
        %v1611 = vld [vmem:[#allocation8 + $0x5c] sm:$0xf]
        %v1612 = vld [vmem:[#allocation8 + $0x60] sm:$0xff]
        %v1613 = vld [vmem:[#allocation8 + $0x68] sm:$0xf]
        %v1614 = vld [vmem:[#allocation8 + $0x6c] sm:$0xff]
        %v1615 = vld [vmem:[#allocation8 + $0x74] sm:$0xf]
        %v1616 = vld [vmem:[#allocation8 + $0x78] sm:$0xff]
        %v1617 = vld [vmem:[#allocation8 + $0x80] sm:$0xf]
        %v1618 = vld [vmem:[#allocation8 + $0x84] sm:$0xff]
        %v1619 = vld [vmem:[#allocation8 + $0x8c] sm:$0xf]
        %v1620 = vld [vmem:[#allocation8 + $0x90] sm:$0xff]
        %v1621 = vld [vmem:[#allocation8 + $0x98] sm:$0xf]
        %v1622 = vld [vmem:[#allocation8 + $0x9c] sm:$0xff]
        %v1623 = vld [vmem:[#allocation8 + $0xa4] sm:$0xf]
        %v1624 = vld [vmem:[#allocation8 + $0xa8] sm:$0xff]
        %v1625 = vld [vmem:[#allocation8 + $0xb0] sm:$0xf]
        %v1626 = vld [vmem:[#allocation8 + $0xb4] sm:$0xff]
        %v1627 = vld [vmem:[#allocation8 + $0xbc] sm:$0xf]
        %v1660 = vunpack.c.l.b16 %v1596
        %v1661 = vunpack.c.h.b16 %v1596
        %v1662 = vunpack.c.l.b16 %v1597
        %v1663 = vunpack.c.l.b16 %v1598
        %v1664 = vunpack.c.h.b16 %v1598
        %v1665 = vunpack.c.l.b16 %v1599
        %v1666 = vunpack.c.l.b16 %v1600
        %v1667 = vunpack.c.h.b16 %v1600
        %v1668 = vunpack.c.l.b16 %v1601
        %v1669 = vunpack.c.l.b16 %v1602
        %v1670 = vunpack.c.h.b16 %v1602
        %v1671 = vunpack.c.l.b16 %v1603
        %v1672 = vunpack.c.l.b16 %v1604
        %v1673 = vunpack.c.h.b16 %v1604
        %v1674 = vunpack.c.l.b16 %v1605
        %v1675 = vunpack.c.l.b16 %v1606
        %v1676 = vunpack.c.h.b16 %v1606
        %v1677 = vunpack.c.l.b16 %v1607
        %v1678 = vunpack.c.l.b16 %v1608
        %v1679 = vunpack.c.h.b16 %v1608
        %v1680 = vunpack.c.l.b16 %v1609
        %v1681 = vunpack.c.l.b16 %v1610
        %v1682 = vunpack.c.h.b16 %v1610
        %v1683 = vunpack.c.l.b16 %v1611
        %v1684 = vunpack.c.l.b16 %v1612
        %v1685 = vunpack.c.h.b16 %v1612
        %v1686 = vunpack.c.l.b16 %v1613
        %v1687 = vunpack.c.l.b16 %v1614
        %v1688 = vunpack.c.h.b16 %v1614
        %v1689 = vunpack.c.l.b16 %v1615
        %v1690 = vunpack.c.l.b16 %v1616
        %v1691 = vunpack.c.h.b16 %v1616
        %v1692 = vunpack.c.l.b16 %v1617
        %v1693 = vunpack.c.l.b16 %v1618
        %v1694 = vunpack.c.h.b16 %v1618
        %v1695 = vunpack.c.l.b16 %v1619
        %v1696 = vunpack.c.l.b16 %v1620
        %v1697 = vunpack.c.h.b16 %v1620
        %v1698 = vunpack.c.l.b16 %v1621
        %v1699 = vunpack.c.l.b16 %v1622
        %v1700 = vunpack.c.h.b16 %v1622
        %v1701 = vunpack.c.l.b16 %v1623
        %v1702 = vunpack.c.l.b16 %v1624
        %v1703 = vunpack.c.h.b16 %v1624
        %v1704 = vunpack.c.l.b16 %v1625
        %v1705 = vunpack.c.l.b16 %v1626
        %v1706 = vunpack.c.h.b16 %v1626
        %v1707 = vunpack.c.l.b16 %v1627
        %v1708 = vpack.c.b16 %v1663, %v1660
        %v1709 = vpack.c.b16 %v1664, %v1661
        %v1710 = vpack.c.b16 %v1665, %v1662
        %v1711 = vpack.c.b16 %v1669, %v1666
        %v1712 = vpack.c.b16 %v1670, %v1667
        %v1713 = vpack.c.b16 %v1671, %v1668
        %v1714 = vpack.c.b16 %v1675, %v1672
        %v1715 = vpack.c.b16 %v1676, %v1673
        %v1716 = vpack.c.b16 %v1677, %v1674
        %v1717 = vpack.c.b16 %v1681, %v1678
        %v1718 = vpack.c.b16 %v1682, %v1679
        %v1719 = vpack.c.b16 %v1683, %v1680
        %v1720 = vpack.c.b16 %v1687, %v1684
        %v1721 = vpack.c.b16 %v1688, %v1685
        %v1722 = vpack.c.b16 %v1689, %v1686
        %v1723 = vpack.c.b16 %v1693, %v1690
        %v1724 = vpack.c.b16 %v1694, %v1691
        %v1725 = vpack.c.b16 %v1695, %v1692
        %v1726 = vpack.c.b16 %v1699, %v1696
        %v1727 = vpack.c.b16 %v1700, %v1697
        %v1728 = vpack.c.b16 %v1701, %v1698
        %v1729 = vpack.c.b16 %v1705, %v1702
        %v1730 = vpack.c.b16 %v1706, %v1703
        %v1731 = vpack.c.b16 %v1707, %v1704
        %1756 = vmatprep.subr.bf16.mxu0 %v1709
        %1757 = vmatpush1.bf16.msra.mxu0 %v1708
        %1758 = vmatprep.subr.bf16.mxu0 %v1712
        %1759 = vmatpush1.bf16.msra.mxu0 %v1711
        %1760 = vmatprep.subr.bf16.mxu0 %v1715
        %1761 = vmatpush1.bf16.msra.mxu0 %v1714
        %1762 = vmatprep.subr.bf16.mxu0 %v1718
        %1763 = vmatpush1.bf16.msra.mxu0 %v1717
        %1764 = vmatprep.subr.bf16.mxu0 %v1721
        %1765 = vmatpush1.bf16.msra.mxu0 %v1720
        %1766 = vmatprep.subr.bf16.mxu0 %v1724
        %1767 = vmatpush1.bf16.msra.mxu0 %v1723
        %1768 = vmatprep.subr.bf16.mxu0 %v1727
        %1769 = vmatpush1.bf16.msra.mxu0 %v1726
        %1770 = vmatprep.subr.bf16.mxu0 %v1730
        %1771 = vmatpush1.bf16.msra.mxu0 %v1729
        %1772 = vmatprep.subr.bf16.mxu0 0
        %1773 = vmatpush1.bf16.msra.mxu0 0
        %1774 = vmatprep.subr.bf16.mxu0 0
        %1775 = vmatpush1.bf16.msra.mxu0 0
        %1776 = vmatprep.subr.bf16.mxu0 0
        %1777 = vmatpush1.bf16.msra.mxu0 0
        %1778 = vmatprep.subr.bf16.mxu0 0
        %1779 = vmatpush1.bf16.msra.mxu0 0
        %1780 = vmatprep.subr.bf16.mxu0 0
        %1781 = vmatpush1.bf16.msra.mxu0 0
        %1782 = vmatprep.subr.bf16.mxu0 0
        %1783 = vmatpush1.bf16.msra.mxu0 0
        %1784 = vmatprep.subr.bf16.mxu0 0
        %1785 = vmatpush1.bf16.msra.mxu0 0
        %1786 = vmatprep.subr.bf16.mxu0 0
        %1787 = vmatpush1.bf16.msra.mxu0 0
        %1788 = vmatprep.mubr.bf16.mxu0 0
        %1789 = vmatmul.mubr.bf16.gmra.mrb[0].mxu0 %v1587
        %v1790 = vpop.f32.mrb[0].mxu0
        %v1791 = vadd.f32 0.0, %v1790
        %v1792 = vpop.f32.mrb[0].mxu0
        %v1793 = vadd.f32 0.0, %v1792
        %v1794 = vpop.f32.mrb[0].mxu0
        %v1795 = vadd.f32 0.0, %v1794
        %v1796 = vpop.f32.mrb[0].mxu0
        %v1797 = vadd.f32 0.0, %v1796
        %1798 = vmatprep.mubr.bf16.mxu0 0
        %1799 = vmatmul.mubr.bf16.gmra.mrb[0].mxu0 %v1588
        %v1800 = vpop.f32.mrb[0].mxu0
        %v1801 = vadd.f32 0.0, %v1800
        %v1802 = vpop.f32.mrb[0].mxu0
        %v1803 = vadd.f32 0.0, %v1802
        %v1804 = vpop.f32.mrb[0].mxu0
        %v1805 = vadd.f32 0.0, %v1804
        %v1806 = vpop.f32.mrb[0].mxu0
        %v1807 = vadd.f32 0.0, %v1806
        %1808 = vmatprep.mubr.bf16.mxu0 0
        %1809 = vmatmul.mubr.bf16.gmra.mrb[0].mxu0 %v1589
        %v1810 = vpop.f32.mrb[0].mxu0
        %v1811 = vadd.f32 0.0, %v1810
        %v1812 = vpop.f32.mrb[0].mxu0
        %v1813 = vadd.f32 0.0, %v1812
        %v1814 = vpop.f32.mrb[0].mxu0
        %v1815 = vadd.f32 0.0, %v1814
        %v1816 = vpop.f32.mrb[0].mxu0
        %v1817 = vadd.f32 0.0, %v1816
        %1818 = vmatprep.mubr.bf16.mxu0 0
        %1819 = vmatmul.mubr.bf16.gmra.mrb[0].mxu0 %v1590
        %v1820 = vpop.f32.mrb[0].mxu0
        %v1821 = vadd.f32 0.0, %v1820
        %v1822 = vpop.f32.mrb[0].mxu0
        %v1823 = vadd.f32 0.0, %v1822
        %v1824 = vpop.f32.mrb[0].mxu0
        %v1825 = vadd.f32 0.0, %v1824
        %v1826 = vpop.f32.mrb[0].mxu0
        %v1827 = vadd.f32 0.0, %v1826
        %1828 = vmatprep.mubr.bf16.mxu0 0
        %1829 = vmatmul.mubr.bf16.gmra.mrb[0].mxu0 %v1591
        %v1830 = vpop.f32.mrb[0].mxu0
        %v1831 = vadd.f32 0.0, %v1830
        %v1832 = vpop.f32.mrb[0].mxu0
        %v1833 = vadd.f32 0.0, %v1832
        %v1834 = vpop.f32.mrb[0].mxu0
        %v1835 = vadd.f32 0.0, %v1834
        %v1836 = vpop.f32.mrb[0].mxu0
        %v1837 = vadd.f32 0.0, %v1836
        %1838 = vmatprep.mubr.bf16.mxu0 0
        %1839 = vmatmul.mubr.bf16.gmra.mrb[0].mxu0 %v1592
        %v1840 = vpop.f32.mrb[0].mxu0
        %v1841 = vadd.f32 0.0, %v1840
        %v1842 = vpop.f32.mrb[0].mxu0
        %v1843 = vadd.f32 0.0, %v1842
        %v1844 = vpop.f32.mrb[0].mxu0
        %v1845 = vadd.f32 0.0, %v1844
        %v1846 = vpop.f32.mrb[0].mxu0
        %v1847 = vadd.f32 0.0, %v1846
        %1848 = vmatprep.mubr.bf16.mxu0 0
        %1849 = vmatmul.mubr.bf16.gmra.mrb[0].mxu0 %v1593
        %v1850 = vpop.f32.mrb[0].mxu0
        %v1851 = vadd.f32 0.0, %v1850
        %v1852 = vpop.f32.mrb[0].mxu0
        %v1853 = vadd.f32 0.0, %v1852
        %v1854 = vpop.f32.mrb[0].mxu0
        %v1855 = vadd.f32 0.0, %v1854
        %v1856 = vpop.f32.mrb[0].mxu0
        %v1857 = vadd.f32 0.0, %v1856
        %1858 = vmatprep.mubr.bf16.mxu0 0
        %1859 = vmatmul.mubr.bf16.gmra.mrb[0].mxu0 %v1594
        %v1860 = vpop.f32.mrb[0].mxu0
        %v1861 = vadd.f32 0.0, %v1860
        %v1862 = vpop.f32.mrb[0].mxu0
        %v1863 = vadd.f32 0.0, %v1862
        %v1864 = vpop.f32.mrb[0].mxu0
        %v1865 = vadd.f32 0.0, %v1864
        %v1866 = vpop.f32.mrb[0].mxu0
        %v1867 = vadd.f32 0.0, %v1866
        %1868 = vdwg.mxu0
        %1869 = vmatprep.subr.bf16.mxu0 0
        %1870 = vmatpush1.bf16.msra.mxu0 %v1710
        %1871 = vmatprep.subr.bf16.mxu0 0
        %1872 = vmatpush1.bf16.msra.mxu0 %v1713
        %1873 = vmatprep.subr.bf16.mxu0 0
        %1874 = vmatpush1.bf16.msra.mxu0 %v1716
        %1875 = vmatprep.subr.bf16.mxu0 0
        %1876 = vmatpush1.bf16.msra.mxu0 %v1719
        %1877 = vmatprep.subr.bf16.mxu0 0
        %1878 = vmatpush1.bf16.msra.mxu0 %v1722
        %1879 = vmatprep.subr.bf16.mxu0 0
        %1880 = vmatpush1.bf16.msra.mxu0 %v1725
        %1881 = vmatprep.subr.bf16.mxu0 0
        %1882 = vmatpush1.bf16.msra.mxu0 %v1728
        %1883 = vmatprep.subr.bf16.mxu0 0
        %1884 = vmatpush1.bf16.msra.mxu0 %v1731
        %1885 = vmatprep.subr.bf16.mxu0 0
        %1886 = vmatpush1.bf16.msra.mxu0 0
        %1887 = vmatprep.subr.bf16.mxu0 0
        %1888 = vmatpush1.bf16.msra.mxu0 0
        %1889 = vmatprep.subr.bf16.mxu0 0
        %1890 = vmatpush1.bf16.msra.mxu0 0
        %1891 = vmatprep.subr.bf16.mxu0 0
        %1892 = vmatpush1.bf16.msra.mxu0 0
        %1893 = vmatprep.subr.bf16.mxu0 0
        %1894 = vmatpush1.bf16.msra.mxu0 0
        %1895 = vmatprep.subr.bf16.mxu0 0
        %1896 = vmatpush1.bf16.msra.mxu0 0
        %1897 = vmatprep.subr.bf16.mxu0 0
        %1898 = vmatpush1.bf16.msra.mxu0 0
        %1899 = vmatprep.subr.bf16.mxu0 0
        %1900 = vmatpush1.bf16.msra.mxu0 0
        %1901 = vmatprep.mubr.bf16.mxu0 0
        %1902 = vmatmul.mubr.bf16.gmra.mrb[0].mxu0 %v1587
        %v1903 = vpop.f32.mrb[0].mxu0
        %v1904 = vadd.f32 0.0, %v1903
        %v1905 = vpop.f32.mrb[0].mxu0
        %v1906 = vpop.f32.mrb[0].mxu0
        %v1907 = vadd.f32 0.0, %v1906
        %v1908 = vpop.f32.mrb[0].mxu0
        %1909 = vmatprep.mubr.bf16.mxu0 0
        %1910 = vmatmul.mubr.bf16.gmra.mrb[0].mxu0 %v1588
        %v1911 = vpop.f32.mrb[0].mxu0
        %v1912 = vadd.f32 0.0, %v1911
        %v1913 = vpop.f32.mrb[0].mxu0
        %v1914 = vpop.f32.mrb[0].mxu0
        %v1915 = vadd.f32 0.0, %v1914
        %v1916 = vpop.f32.mrb[0].mxu0
        %1917 = vmatprep.mubr.bf16.mxu0 0
        %1918 = vmatmul.mubr.bf16.gmra.mrb[0].mxu0 %v1589
        %v1919 = vpop.f32.mrb[0].mxu0
        %v1920 = vadd.f32 0.0, %v1919
        %v1921 = vpop.f32.mrb[0].mxu0
        %v1922 = vpop.f32.mrb[0].mxu0
        %v1923 = vadd.f32 0.0, %v1922
        %v1924 = vpop.f32.mrb[0].mxu0
        %1925 = vmatprep.mubr.bf16.mxu0 0
        %1926 = vmatmul.mubr.bf16.gmra.mrb[0].mxu0 %v1590
        %v1927 = vpop.f32.mrb[0].mxu0
        %v1928 = vadd.f32 0.0, %v1927
        %v1929 = vpop.f32.mrb[0].mxu0
        %v1930 = vpop.f32.mrb[0].mxu0
        %v1931 = vadd.f32 0.0, %v1930
        %v1932 = vpop.f32.mrb[0].mxu0
        %1933 = vmatprep.mubr.bf16.mxu0 0
        %1934 = vmatmul.mubr.bf16.gmra.mrb[0].mxu0 %v1591
        %v1935 = vpop.f32.mrb[0].mxu0
        %v1936 = vadd.f32 0.0, %v1935
        %v1937 = vpop.f32.mrb[0].mxu0
        %v1938 = vpop.f32.mrb[0].mxu0
        %v1939 = vadd.f32 0.0, %v1938
        %v1940 = vpop.f32.mrb[0].mxu0
        %1941 = vmatprep.mubr.bf16.mxu0 0
        %1942 = vmatmul.mubr.bf16.gmra.mrb[0].mxu0 %v1592
        %v1943 = vpop.f32.mrb[0].mxu0
        %v1944 = vadd.f32 0.0, %v1943
        %v1945 = vpop.f32.mrb[0].mxu0
        %v1946 = vpop.f32.mrb[0].mxu0
        %v1947 = vadd.f32 0.0, %v1946
        %v1948 = vpop.f32.mrb[0].mxu0
        %1949 = vmatprep.mubr.bf16.mxu0 0
        %1950 = vmatmul.mubr.bf16.gmra.mrb[0].mxu0 %v1593
        %v1951 = vpop.f32.mrb[0].mxu0
        %v1952 = vadd.f32 0.0, %v1951
        %v1953 = vpop.f32.mrb[0].mxu0
        %v1954 = vpop.f32.mrb[0].mxu0
        %v1955 = vadd.f32 0.0, %v1954
        %v1956 = vpop.f32.mrb[0].mxu0
        %1957 = vmatprep.mubr.bf16.mxu0 0
        %1958 = vmatmul.mubr.bf16.gmra.mrb[0].mxu0 %v1594
        %v1959 = vpop.f32.mrb[0].mxu0
        %v1960 = vadd.f32 0.0, %v1959
        %v1961 = vpop.f32.mrb[0].mxu0
        %v1962 = vpop.f32.mrb[0].mxu0
        %v1963 = vadd.f32 0.0, %v1962
        %v1964 = vpop.f32.mrb[0].mxu0
        %1965 = vdwg.mxu0
        %v1966 = vld [vmem:[%s6] sm:$0x1]
        %v1968 = vlaneseq
        %v1969 = vshrl.u32 %v1968, 7
        %v1970 = vsub.s32 0, %v1969
        %v1971 = vrot.slane %v1966, %v1970
        %v1973 = vadd.f32 %v1793, %v1971
        %v1974 = vadd.f32 %v1797, %v1971
        %v1975 = vadd.f32 %v1803, %v1971
        %v1976 = vadd.f32 %v1807, %v1971
        %v1977 = vadd.f32 %v1813, %v1971
        %v1978 = vadd.f32 %v1817, %v1971
        %v1979 = vadd.f32 %v1823, %v1971
        %v1980 = vadd.f32 %v1827, %v1971
        %v1981 = vadd.f32 %v1833, %v1971
        %v1982 = vadd.f32 %v1837, %v1971
        %v1983 = vadd.f32 %v1843, %v1971
        %v1984 = vadd.f32 %v1847, %v1971
        %v1985 = vadd.f32 %v1853, %v1971
        %v1986 = vadd.f32 %v1857, %v1971
        %v1987 = vadd.f32 %v1863, %v1971
        %v1988 = vadd.f32 %v1867, %v1971
        %v1989 = vmul.f32 %v1865, %v490
        %v1990 = vmul.f32 %v1791, %v491
        %v1991 = vmul.f32 %v1795, %v492
        %v1992 = vmul.f32 %v1801, %v493
        %v1993 = vmul.f32 %v1805, %v494
        %v1994 = vmul.f32 %v1811, %v495
        %v1995 = vmul.f32 %v1815, %v496
        %v1996 = vmul.f32 %v1821, %v497
        %v1997 = vmul.f32 %v1825, %v498
        %v1998 = vmul.f32 %v1831, %v499
        %v1999 = vmul.f32 %v1835, %v500
        %v2000 = vmul.f32 %v1841, %v501
        %v2001 = vmul.f32 %v1845, %v502
        %v2002 = vmul.f32 %v1851, %v503
        %v2003 = vmul.f32 %v1855, %v504
        %v2004 = vmul.f32 %v1861, %v505
        %v2005 = vadd.f32 %v1973, %v1989
        %v2006 = vadd.f32 %v1974, %v1990
        %v2007 = vadd.f32 %v1975, %v1991
        %v2008 = vadd.f32 %v1976, %v1992
        %v2009 = vadd.f32 %v1977, %v1993
        %v2010 = vadd.f32 %v1978, %v1994
        %v2011 = vadd.f32 %v1979, %v1995
        %v2012 = vadd.f32 %v1980, %v1996
        %v2013 = vadd.f32 %v1981, %v1997
        %v2014 = vadd.f32 %v1982, %v1998
        %v2015 = vadd.f32 %v1983, %v1999
        %v2016 = vadd.f32 %v1984, %v2000
        %v2017 = vadd.f32 %v1985, %v2001
        %v2018 = vadd.f32 %v1986, %v2002
        %v2019 = vadd.f32 %v1987, %v2003
        %v2020 = vadd.f32 %v1988, %v2004
        %v2021 = vmul.f32 %v1907, %v538
        %v2022 = vmul.f32 %v1912, %v539
        %v2023 = vmul.f32 %v1915, %v540
        %v2024 = vmul.f32 %v1920, %v541
        %v2025 = vmul.f32 %v1923, %v542
        %v2026 = vmul.f32 %v1928, %v543
        %v2027 = vmul.f32 %v1931, %v544
        %v2028 = vmul.f32 %v1936, %v545
        %v2029 = vmul.f32 %v1939, %v546
        %v2030 = vmul.f32 %v1944, %v547
        %v2031 = vmul.f32 %v1947, %v548
        %v2032 = vmul.f32 %v1952, %v549
        %v2033 = vmul.f32 %v1955, %v550
        %v2034 = vmul.f32 %v1960, %v551
        %v2035 = vmul.f32 %v1963, %v552
        %v2036 = vmul.f32 %v1904, %v553
        %v2037 = vadd.f32 %v2005, %v2021
        %v2038 = vadd.f32 %v2006, %v2022
        %v2039 = vadd.f32 %v2007, %v2023
        %v2040 = vadd.f32 %v2008, %v2024
        %v2041 = vadd.f32 %v2009, %v2025
        %v2042 = vadd.f32 %v2010, %v2026
        %v2043 = vadd.f32 %v2011, %v2027
        %v2044 = vadd.f32 %v2012, %v2028
        %v2045 = vadd.f32 %v2013, %v2029
        %v2046 = vadd.f32 %v2014, %v2030
        %v2047 = vadd.f32 %v2015, %v2031
        %v2048 = vadd.f32 %v2016, %v2032
        %v2049 = vadd.f32 %v2017, %v2033
        %v2050 = vadd.f32 %v2018, %v2034
        %v2051 = vadd.f32 %v2019, %v2035
        %v2052 = vadd.f32 %v2020, %v2036
        %v2053 = vmax.f32 %v2037, 0.0
        %v2054 = vmax.f32 %v2038, 0.0
        %v2055 = vmax.f32 %v2039, 0.0
        %v2056 = vmax.f32 %v2040, 0.0
        %v2057 = vmax.f32 %v2041, 0.0
        %v2058 = vmax.f32 %v2042, 0.0
        %v2059 = vmax.f32 %v2043, 0.0
        %v2060 = vmax.f32 %v2044, 0.0
        %v2061 = vmax.f32 %v2045, 0.0
        %v2062 = vmax.f32 %v2046, 0.0
        %v2063 = vmax.f32 %v2047, 0.0
        %v2064 = vmax.f32 %v2048, 0.0
        %v2065 = vmax.f32 %v2049, 0.0
        %v2066 = vmax.f32 %v2050, 0.0
        %v2067 = vmax.f32 %v2051, 0.0
        %v2068 = vmax.f32 %v2052, 0.0
        %v2069 = vmax.f32 %v2053, %v2057
        %v2070 = vmax.f32 %v2054, %v2058
        %v2071 = vmax.f32 %v2055, %v2059
        %v2072 = vmax.f32 %v2056, %v2060
        %v2073 = vmax.f32 %v2069, %v2061
        %v2074 = vmax.f32 %v2070, %v2062
        %v2075 = vmax.f32 %v2071, %v2063
        %v2076 = vmax.f32 %v2072, %v2064
        %v2077 = vmax.f32 %v2073, %v2065
        %v2078 = vmax.f32 %v2074, %v2066
        %v2079 = vmax.f32 %v2075, %v2067
        %v2080 = vmax.f32 %v2076, %v2068
        %v2081 = vmax.f32 %v2077, %v2078
        %v2082 = vmax.f32 %v2079, %v2080
        %v2083 = vmax.f32 %v2081, %v2082
        %v2084 = vpack.c.bf16 %v2054, %v2053
        %v2085 = vpack.c.bf16 %v2056, %v2055
        %v2086 = vpack.c.bf16 %v2058, %v2057
        %v2087 = vpack.c.bf16 %v2060, %v2059
        %v2088 = vpack.c.bf16 %v2062, %v2061
        %v2089 = vpack.c.bf16 %v2064, %v2063
        %v2090 = vpack.c.bf16 %v2066, %v2065
        %v2091 = vpack.c.bf16 %v2068, %v2067
        %2092 = vst [vmem:[%s407 + $0x10] sm:$0xff] %v2083
        %v2093 = vld [vmem:[#allocation10] sm:$0xff]
        %v2094 = vld [vmem:[#allocation10 + $0x8] sm:$0xf]
        %v2095 = vld [vmem:[#allocation10 + $0xc] sm:$0xff]
        %v2096 = vld [vmem:[#allocation10 + $0x14] sm:$0xf]
        %v2097 = vld [vmem:[#allocation10 + $0x18] sm:$0xff]
        %v2098 = vld [vmem:[#allocation10 + $0x20] sm:$0xf]
        %v2099 = vld [vmem:[#allocation10 + $0x24] sm:$0xff]
        %v2100 = vld [vmem:[#allocation10 + $0x2c] sm:$0xf]
        %v2101 = vld [vmem:[#allocation10 + $0x30] sm:$0xff]
        %v2102 = vld [vmem:[#allocation10 + $0x38] sm:$0xf]
        %v2103 = vld [vmem:[#allocation10 + $0x3c] sm:$0xff]
        %v2104 = vld [vmem:[#allocation10 + $0x44] sm:$0xf]
        %v2105 = vld [vmem:[#allocation10 + $0x48] sm:$0xff]
        %v2106 = vld [vmem:[#allocation10 + $0x50] sm:$0xf]
        %v2107 = vld [vmem:[#allocation10 + $0x54] sm:$0xff]
        %v2108 = vld [vmem:[#allocation10 + $0x5c] sm:$0xf]
        %v2109 = vld [vmem:[#allocation10 + $0x60] sm:$0xff]
        %v2110 = vld [vmem:[#allocation10 + $0x68] sm:$0xf]
        %v2111 = vld [vmem:[#allocation10 + $0x6c] sm:$0xff]
        %v2112 = vld [vmem:[#allocation10 + $0x74] sm:$0xf]
        %v2113 = vld [vmem:[#allocation10 + $0x78] sm:$0xff]
        %v2114 = vld [vmem:[#allocation10 + $0x80] sm:$0xf]
        %v2115 = vld [vmem:[#allocation10 + $0x84] sm:$0xff]
        %v2116 = vld [vmem:[#allocation10 + $0x8c] sm:$0xf]
        %v2117 = vld [vmem:[#allocation10 + $0x90] sm:$0xff]
        %v2118 = vld [vmem:[#allocation10 + $0x98] sm:$0xf]
        %v2119 = vld [vmem:[#allocation10 + $0x9c] sm:$0xff]
        %v2120 = vld [vmem:[#allocation10 + $0xa4] sm:$0xf]
        %v2121 = vld [vmem:[#allocation10 + $0xa8] sm:$0xff]
        %v2122 = vld [vmem:[#allocation10 + $0xb0] sm:$0xf]
        %v2123 = vld [vmem:[#allocation10 + $0xb4] sm:$0xff]
        %v2124 = vld [vmem:[#allocation10 + $0xbc] sm:$0xf]
        %v2157 = vunpack.c.l.b16 %v2093
        %v2158 = vunpack.c.h.b16 %v2093
        %v2159 = vunpack.c.l.b16 %v2094
        %v2160 = vunpack.c.l.b16 %v2095
        %v2161 = vunpack.c.h.b16 %v2095
        %v2162 = vunpack.c.l.b16 %v2096
        %v2163 = vunpack.c.l.b16 %v2097
        %v2164 = vunpack.c.h.b16 %v2097
        %v2165 = vunpack.c.l.b16 %v2098
        %v2166 = vunpack.c.l.b16 %v2099
        %v2167 = vunpack.c.h.b16 %v2099
        %v2168 = vunpack.c.l.b16 %v2100
        %v2169 = vunpack.c.l.b16 %v2101
        %v2170 = vunpack.c.h.b16 %v2101
        %v2171 = vunpack.c.l.b16 %v2102
        %v2172 = vunpack.c.l.b16 %v2103
        %v2173 = vunpack.c.h.b16 %v2103
        %v2174 = vunpack.c.l.b16 %v2104
        %v2175 = vunpack.c.l.b16 %v2105
        %v2176 = vunpack.c.h.b16 %v2105
        %v2177 = vunpack.c.l.b16 %v2106
        %v2178 = vunpack.c.l.b16 %v2107
        %v2179 = vunpack.c.h.b16 %v2107
        %v2180 = vunpack.c.l.b16 %v2108
        %v2181 = vunpack.c.l.b16 %v2109
        %v2182 = vunpack.c.h.b16 %v2109
        %v2183 = vunpack.c.l.b16 %v2110
        %v2184 = vunpack.c.l.b16 %v2111
        %v2185 = vunpack.c.h.b16 %v2111
        %v2186 = vunpack.c.l.b16 %v2112
        %v2187 = vunpack.c.l.b16 %v2113
        %v2188 = vunpack.c.h.b16 %v2113
        %v2189 = vunpack.c.l.b16 %v2114
        %v2190 = vunpack.c.l.b16 %v2115
        %v2191 = vunpack.c.h.b16 %v2115
        %v2192 = vunpack.c.l.b16 %v2116
        %v2193 = vunpack.c.l.b16 %v2117
        %v2194 = vunpack.c.h.b16 %v2117
        %v2195 = vunpack.c.l.b16 %v2118
        %v2196 = vunpack.c.l.b16 %v2119
        %v2197 = vunpack.c.h.b16 %v2119
        %v2198 = vunpack.c.l.b16 %v2120
        %v2199 = vunpack.c.l.b16 %v2121
        %v2200 = vunpack.c.h.b16 %v2121
        %v2201 = vunpack.c.l.b16 %v2122
        %v2202 = vunpack.c.l.b16 %v2123
        %v2203 = vunpack.c.h.b16 %v2123
        %v2204 = vunpack.c.l.b16 %v2124
        %v2205 = vpack.c.b16 %v2160, %v2157
        %v2206 = vpack.c.b16 %v2161, %v2158
        %v2207 = vpack.c.b16 %v2162, %v2159
        %v2208 = vpack.c.b16 %v2166, %v2163
        %v2209 = vpack.c.b16 %v2167, %v2164
        %v2210 = vpack.c.b16 %v2168, %v2165
        %v2211 = vpack.c.b16 %v2172, %v2169
        %v2212 = vpack.c.b16 %v2173, %v2170
        %v2213 = vpack.c.b16 %v2174, %v2171
        %v2214 = vpack.c.b16 %v2178, %v2175
        %v2215 = vpack.c.b16 %v2179, %v2176
        %v2216 = vpack.c.b16 %v2180, %v2177
        %v2217 = vpack.c.b16 %v2184, %v2181
        %v2218 = vpack.c.b16 %v2185, %v2182
        %v2219 = vpack.c.b16 %v2186, %v2183
        %v2220 = vpack.c.b16 %v2190, %v2187
        %v2221 = vpack.c.b16 %v2191, %v2188
        %v2222 = vpack.c.b16 %v2192, %v2189
        %v2223 = vpack.c.b16 %v2196, %v2193
        %v2224 = vpack.c.b16 %v2197, %v2194
        %v2225 = vpack.c.b16 %v2198, %v2195
        %v2226 = vpack.c.b16 %v2202, %v2199
        %v2227 = vpack.c.b16 %v2203, %v2200
        %v2228 = vpack.c.b16 %v2204, %v2201
        %2253 = vmatprep.subr.bf16.mxu0 %v2206
        %2254 = vmatpush1.bf16.msra.mxu0 %v2205
        %2255 = vmatprep.subr.bf16.mxu0 %v2209
        %2256 = vmatpush1.bf16.msra.mxu0 %v2208
        %2257 = vmatprep.subr.bf16.mxu0 %v2212
        %2258 = vmatpush1.bf16.msra.mxu0 %v2211
        %2259 = vmatprep.subr.bf16.mxu0 %v2215
        %2260 = vmatpush1.bf16.msra.mxu0 %v2214
        %2261 = vmatprep.subr.bf16.mxu0 %v2218
        %2262 = vmatpush1.bf16.msra.mxu0 %v2217
        %2263 = vmatprep.subr.bf16.mxu0 %v2221
        %2264 = vmatpush1.bf16.msra.mxu0 %v2220
        %2265 = vmatprep.subr.bf16.mxu0 %v2224
        %2266 = vmatpush1.bf16.msra.mxu0 %v2223
        %2267 = vmatprep.subr.bf16.mxu0 %v2227
        %2268 = vmatpush1.bf16.msra.mxu0 %v2226
        %2269 = vmatprep.subr.bf16.mxu0 0
        %2270 = vmatpush1.bf16.msra.mxu0 0
        %2271 = vmatprep.subr.bf16.mxu0 0
        %2272 = vmatpush1.bf16.msra.mxu0 0
        %2273 = vmatprep.subr.bf16.mxu0 0
        %2274 = vmatpush1.bf16.msra.mxu0 0
        %2275 = vmatprep.subr.bf16.mxu0 0
        %2276 = vmatpush1.bf16.msra.mxu0 0
        %2277 = vmatprep.subr.bf16.mxu0 0
        %2278 = vmatpush1.bf16.msra.mxu0 0
        %2279 = vmatprep.subr.bf16.mxu0 0
        %2280 = vmatpush1.bf16.msra.mxu0 0
        %2281 = vmatprep.subr.bf16.mxu0 0
        %2282 = vmatpush1.bf16.msra.mxu0 0
        %2283 = vmatprep.subr.bf16.mxu0 0
        %2284 = vmatpush1.bf16.msra.mxu0 0
        %2285 = vmatprep.mubr.bf16.mxu0 0
        %2286 = vmatmul.mubr.bf16.gmra.mrb[0].mxu0 %v2084
        %v2287 = vpop.f32.mrb[0].mxu0
        %v2288 = vadd.f32 0.0, %v2287
        %v2289 = vpop.f32.mrb[0].mxu0
        %v2290 = vadd.f32 0.0, %v2289
        %v2291 = vpop.f32.mrb[0].mxu0
        %v2292 = vadd.f32 0.0, %v2291
        %v2293 = vpop.f32.mrb[0].mxu0
        %v2294 = vadd.f32 0.0, %v2293
        %2295 = vmatprep.mubr.bf16.mxu0 0
        %2296 = vmatmul.mubr.bf16.gmra.mrb[0].mxu0 %v2085
        %v2297 = vpop.f32.mrb[0].mxu0
        %v2298 = vadd.f32 0.0, %v2297
        %v2299 = vpop.f32.mrb[0].mxu0
        %v2300 = vadd.f32 0.0, %v2299
        %v2301 = vpop.f32.mrb[0].mxu0
        %v2302 = vadd.f32 0.0, %v2301
        %v2303 = vpop.f32.mrb[0].mxu0
        %v2304 = vadd.f32 0.0, %v2303
        %2305 = vmatprep.mubr.bf16.mxu0 0
        %2306 = vmatmul.mubr.bf16.gmra.mrb[0].mxu0 %v2086
        %v2307 = vpop.f32.mrb[0].mxu0
        %v2308 = vadd.f32 0.0, %v2307
        %v2309 = vpop.f32.mrb[0].mxu0
        %v2310 = vadd.f32 0.0, %v2309
        %v2311 = vpop.f32.mrb[0].mxu0
        %v2312 = vadd.f32 0.0, %v2311
        %v2313 = vpop.f32.mrb[0].mxu0
        %v2314 = vadd.f32 0.0, %v2313
        %2315 = vmatprep.mubr.bf16.mxu0 0
        %2316 = vmatmul.mubr.bf16.gmra.mrb[0].mxu0 %v2087
        %v2317 = vpop.f32.mrb[0].mxu0
        %v2318 = vadd.f32 0.0, %v2317
        %v2319 = vpop.f32.mrb[0].mxu0
        %v2320 = vadd.f32 0.0, %v2319
        %v2321 = vpop.f32.mrb[0].mxu0
        %v2322 = vadd.f32 0.0, %v2321
        %v2323 = vpop.f32.mrb[0].mxu0
        %v2324 = vadd.f32 0.0, %v2323
        %2325 = vmatprep.mubr.bf16.mxu0 0
        %2326 = vmatmul.mubr.bf16.gmra.mrb[0].mxu0 %v2088
        %v2327 = vpop.f32.mrb[0].mxu0
        %v2328 = vadd.f32 0.0, %v2327
        %v2329 = vpop.f32.mrb[0].mxu0
        %v2330 = vadd.f32 0.0, %v2329
        %v2331 = vpop.f32.mrb[0].mxu0
        %v2332 = vadd.f32 0.0, %v2331
        %v2333 = vpop.f32.mrb[0].mxu0
        %v2334 = vadd.f32 0.0, %v2333
        %2335 = vmatprep.mubr.bf16.mxu0 0
        %2336 = vmatmul.mubr.bf16.gmra.mrb[0].mxu0 %v2089
        %v2337 = vpop.f32.mrb[0].mxu0
        %v2338 = vadd.f32 0.0, %v2337
        %v2339 = vpop.f32.mrb[0].mxu0
        %v2340 = vadd.f32 0.0, %v2339
        %v2341 = vpop.f32.mrb[0].mxu0
        %v2342 = vadd.f32 0.0, %v2341
        %v2343 = vpop.f32.mrb[0].mxu0
        %v2344 = vadd.f32 0.0, %v2343
        %2345 = vmatprep.mubr.bf16.mxu0 0
        %2346 = vmatmul.mubr.bf16.gmra.mrb[0].mxu0 %v2090
        %v2347 = vpop.f32.mrb[0].mxu0
        %v2348 = vadd.f32 0.0, %v2347
        %v2349 = vpop.f32.mrb[0].mxu0
        %v2350 = vadd.f32 0.0, %v2349
        %v2351 = vpop.f32.mrb[0].mxu0
        %v2352 = vadd.f32 0.0, %v2351
        %v2353 = vpop.f32.mrb[0].mxu0
        %v2354 = vadd.f32 0.0, %v2353
        %2355 = vmatprep.mubr.bf16.mxu0 0
        %2356 = vmatmul.mubr.bf16.gmra.mrb[0].mxu0 %v2091
        %v2357 = vpop.f32.mrb[0].mxu0
        %v2358 = vadd.f32 0.0, %v2357
        %v2359 = vpop.f32.mrb[0].mxu0
        %v2360 = vadd.f32 0.0, %v2359
        %v2361 = vpop.f32.mrb[0].mxu0
        %v2362 = vadd.f32 0.0, %v2361
        %v2363 = vpop.f32.mrb[0].mxu0
        %v2364 = vadd.f32 0.0, %v2363
        %2365 = vdwg.mxu0
        %2366 = vmatprep.subr.bf16.mxu0 0
        %2367 = vmatpush1.bf16.msra.mxu0 %v2207
        %2368 = vmatprep.subr.bf16.mxu0 0
        %2369 = vmatpush1.bf16.msra.mxu0 %v2210
        %2370 = vmatprep.subr.bf16.mxu0 0
        %2371 = vmatpush1.bf16.msra.mxu0 %v2213
        %2372 = vmatprep.subr.bf16.mxu0 0
        %2373 = vmatpush1.bf16.msra.mxu0 %v2216
        %2374 = vmatprep.subr.bf16.mxu0 0
        %2375 = vmatpush1.bf16.msra.mxu0 %v2219
        %2376 = vmatprep.subr.bf16.mxu0 0
        %2377 = vmatpush1.bf16.msra.mxu0 %v2222
        %2378 = vmatprep.subr.bf16.mxu0 0
        %2379 = vmatpush1.bf16.msra.mxu0 %v2225
        %2380 = vmatprep.subr.bf16.mxu0 0
        %2381 = vmatpush1.bf16.msra.mxu0 %v2228
        %2382 = vmatprep.subr.bf16.mxu0 0
        %2383 = vmatpush1.bf16.msra.mxu0 0
        %2384 = vmatprep.subr.bf16.mxu0 0
        %2385 = vmatpush1.bf16.msra.mxu0 0
        %2386 = vmatprep.subr.bf16.mxu0 0
        %2387 = vmatpush1.bf16.msra.mxu0 0
        %2388 = vmatprep.subr.bf16.mxu0 0
        %2389 = vmatpush1.bf16.msra.mxu0 0
        %2390 = vmatprep.subr.bf16.mxu0 0
        %2391 = vmatpush1.bf16.msra.mxu0 0
        %2392 = vmatprep.subr.bf16.mxu0 0
        %2393 = vmatpush1.bf16.msra.mxu0 0
        %2394 = vmatprep.subr.bf16.mxu0 0
        %2395 = vmatpush1.bf16.msra.mxu0 0
        %2396 = vmatprep.subr.bf16.mxu0 0
        %2397 = vmatpush1.bf16.msra.mxu0 0
        %2398 = vmatprep.mubr.bf16.mxu0 0
        %2399 = vmatmul.mubr.bf16.gmra.mrb[0].mxu0 %v2084
        %v2400 = vpop.f32.mrb[0].mxu0
        %v2401 = vadd.f32 0.0, %v2400
        %v2402 = vpop.f32.mrb[0].mxu0
        %v2403 = vpop.f32.mrb[0].mxu0
        %v2404 = vadd.f32 0.0, %v2403
        %v2405 = vpop.f32.mrb[0].mxu0
        %2406 = vmatprep.mubr.bf16.mxu0 0
        %2407 = vmatmul.mubr.bf16.gmra.mrb[0].mxu0 %v2085
        %v2408 = vpop.f32.mrb[0].mxu0
        %v2409 = vadd.f32 0.0, %v2408
        %v2410 = vpop.f32.mrb[0].mxu0
        %v2411 = vpop.f32.mrb[0].mxu0
        %v2412 = vadd.f32 0.0, %v2411
        %v2413 = vpop.f32.mrb[0].mxu0
        %2414 = vmatprep.mubr.bf16.mxu0 0
        %2415 = vmatmul.mubr.bf16.gmra.mrb[0].mxu0 %v2086
        %v2416 = vpop.f32.mrb[0].mxu0
        %v2417 = vadd.f32 0.0, %v2416
        %v2418 = vpop.f32.mrb[0].mxu0
        %v2419 = vpop.f32.mrb[0].mxu0
        %v2420 = vadd.f32 0.0, %v2419
        %v2421 = vpop.f32.mrb[0].mxu0
        %2422 = vmatprep.mubr.bf16.mxu0 0
        %2423 = vmatmul.mubr.bf16.gmra.mrb[0].mxu0 %v2087
        %v2424 = vpop.f32.mrb[0].mxu0
        %v2425 = vadd.f32 0.0, %v2424
        %v2426 = vpop.f32.mrb[0].mxu0
        %v2427 = vpop.f32.mrb[0].mxu0
        %v2428 = vadd.f32 0.0, %v2427
        %v2429 = vpop.f32.mrb[0].mxu0
        %2430 = vmatprep.mubr.bf16.mxu0 0
        %2431 = vmatmul.mubr.bf16.gmra.mrb[0].mxu0 %v2088
        %v2432 = vpop.f32.mrb[0].mxu0
        %v2433 = vadd.f32 0.0, %v2432
        %v2434 = vpop.f32.mrb[0].mxu0
        %v2435 = vpop.f32.mrb[0].mxu0
        %v2436 = vadd.f32 0.0, %v2435
        %v2437 = vpop.f32.mrb[0].mxu0
        %2438 = vmatprep.mubr.bf16.mxu0 0
        %2439 = vmatmul.mubr.bf16.gmra.mrb[0].mxu0 %v2089
        %v2440 = vpop.f32.mrb[0].mxu0
        %v2441 = vadd.f32 0.0, %v2440
        %v2442 = vpop.f32.mrb[0].mxu0
        %v2443 = vpop.f32.mrb[0].mxu0
        %v2444 = vadd.f32 0.0, %v2443
        %v2445 = vpop.f32.mrb[0].mxu0
        %2446 = vmatprep.mubr.bf16.mxu0 0
        %2447 = vmatmul.mubr.bf16.gmra.mrb[0].mxu0 %v2090
        %v2448 = vpop.f32.mrb[0].mxu0
        %v2449 = vadd.f32 0.0, %v2448
        %v2450 = vpop.f32.mrb[0].mxu0
        %v2451 = vpop.f32.mrb[0].mxu0
        %v2452 = vadd.f32 0.0, %v2451
        %v2453 = vpop.f32.mrb[0].mxu0
        %2454 = vmatprep.mubr.bf16.mxu0 0
        %2455 = vmatmul.mubr.bf16.gmra.mrb[0].mxu0 %v2091
        %v2456 = vpop.f32.mrb[0].mxu0
        %v2457 = vadd.f32 0.0, %v2456
        %v2458 = vpop.f32.mrb[0].mxu0
        %v2459 = vpop.f32.mrb[0].mxu0
        %v2460 = vadd.f32 0.0, %v2459
        %v2461 = vpop.f32.mrb[0].mxu0
        %2462 = vdwg.mxu0
        %v2463 = vld [vmem:[%s8] sm:$0x1]
        %v2465 = vlaneseq
        %v2466 = vshrl.u32 %v2465, 7
        %v2467 = vsub.s32 0, %v2466
        %v2468 = vrot.slane %v2463, %v2467
        %v2470 = vadd.f32 %v2290, %v2468
        %v2471 = vadd.f32 %v2294, %v2468
        %v2472 = vadd.f32 %v2300, %v2468
        %v2473 = vadd.f32 %v2304, %v2468
        %v2474 = vadd.f32 %v2310, %v2468
        %v2475 = vadd.f32 %v2314, %v2468
        %v2476 = vadd.f32 %v2320, %v2468
        %v2477 = vadd.f32 %v2324, %v2468
        %v2478 = vadd.f32 %v2330, %v2468
        %v2479 = vadd.f32 %v2334, %v2468
        %v2480 = vadd.f32 %v2340, %v2468
        %v2481 = vadd.f32 %v2344, %v2468
        %v2482 = vadd.f32 %v2350, %v2468
        %v2483 = vadd.f32 %v2354, %v2468
        %v2484 = vadd.f32 %v2360, %v2468
        %v2485 = vadd.f32 %v2364, %v2468
        %v2486 = vmul.f32 %v2362, %v490
        %v2487 = vmul.f32 %v2288, %v491
        %v2488 = vmul.f32 %v2292, %v492
        %v2489 = vmul.f32 %v2298, %v493
        %v2490 = vmul.f32 %v2302, %v494
        %v2491 = vmul.f32 %v2308, %v495
        %v2492 = vmul.f32 %v2312, %v496
        %v2493 = vmul.f32 %v2318, %v497
        %v2494 = vmul.f32 %v2322, %v498
        %v2495 = vmul.f32 %v2328, %v499
        %v2496 = vmul.f32 %v2332, %v500
        %v2497 = vmul.f32 %v2338, %v501
        %v2498 = vmul.f32 %v2342, %v502
        %v2499 = vmul.f32 %v2348, %v503
        %v2500 = vmul.f32 %v2352, %v504
        %v2501 = vmul.f32 %v2358, %v505
        %v2502 = vadd.f32 %v2470, %v2486
        %v2503 = vadd.f32 %v2471, %v2487
        %v2504 = vadd.f32 %v2472, %v2488
        %v2505 = vadd.f32 %v2473, %v2489
        %v2506 = vadd.f32 %v2474, %v2490
        %v2507 = vadd.f32 %v2475, %v2491
        %v2508 = vadd.f32 %v2476, %v2492
        %v2509 = vadd.f32 %v2477, %v2493
        %v2510 = vadd.f32 %v2478, %v2494
        %v2511 = vadd.f32 %v2479, %v2495
        %v2512 = vadd.f32 %v2480, %v2496
        %v2513 = vadd.f32 %v2481, %v2497
        %v2514 = vadd.f32 %v2482, %v2498
        %v2515 = vadd.f32 %v2483, %v2499
        %v2516 = vadd.f32 %v2484, %v2500
        %v2517 = vadd.f32 %v2485, %v2501
        %v2518 = vmul.f32 %v2404, %v538
        %v2519 = vmul.f32 %v2409, %v539
        %v2520 = vmul.f32 %v2412, %v540
        %v2521 = vmul.f32 %v2417, %v541
        %v2522 = vmul.f32 %v2420, %v542
        %v2523 = vmul.f32 %v2425, %v543
        %v2524 = vmul.f32 %v2428, %v544
        %v2525 = vmul.f32 %v2433, %v545
        %v2526 = vmul.f32 %v2436, %v546
        %v2527 = vmul.f32 %v2441, %v547
        %v2528 = vmul.f32 %v2444, %v548
        %v2529 = vmul.f32 %v2449, %v549
        %v2530 = vmul.f32 %v2452, %v550
        %v2531 = vmul.f32 %v2457, %v551
        %v2532 = vmul.f32 %v2460, %v552
        %v2533 = vmul.f32 %v2401, %v553
        %v2534 = vadd.f32 %v2502, %v2518
        %v2535 = vadd.f32 %v2503, %v2519
        %v2536 = vadd.f32 %v2504, %v2520
        %v2537 = vadd.f32 %v2505, %v2521
        %v2538 = vadd.f32 %v2506, %v2522
        %v2539 = vadd.f32 %v2507, %v2523
        %v2540 = vadd.f32 %v2508, %v2524
        %v2541 = vadd.f32 %v2509, %v2525
        %v2542 = vadd.f32 %v2510, %v2526
        %v2543 = vadd.f32 %v2511, %v2527
        %v2544 = vadd.f32 %v2512, %v2528
        %v2545 = vadd.f32 %v2513, %v2529
        %v2546 = vadd.f32 %v2514, %v2530
        %v2547 = vadd.f32 %v2515, %v2531
        %v2548 = vadd.f32 %v2516, %v2532
        %v2549 = vadd.f32 %v2517, %v2533
        %v2550 = vmax.f32 %v2534, %v2538
        %v2551 = vmax.f32 %v2535, %v2539
        %v2552 = vmax.f32 %v2536, %v2540
        %v2553 = vmax.f32 %v2537, %v2541
        %v2554 = vmax.f32 %v2550, %v2542
        %v2555 = vmax.f32 %v2551, %v2543
        %v2556 = vmax.f32 %v2552, %v2544
        %v2557 = vmax.f32 %v2553, %v2545
        %v2558 = vmax.f32 %v2554, %v2546
        %v2559 = vmax.f32 %v2555, %v2547
        %v2560 = vmax.f32 %v2556, %v2548
        %v2561 = vmax.f32 %v2557, %v2549
        %v2562 = vmax.f32 %v2558, %v2559
        %v2563 = vmax.f32 %v2560, %v2561
        %v2564 = vmax.f32 %v2562, %v2563
        %v2565 = vmax.f32 %v2564, 0.0
        %2566 = vst [vmem:[%s407 + $0x18] sm:$0xff] %v2565
        %s2567 = sand.u32 %s230, 1
        %s2568 = scalar_lea.sflag [#allocation4], %s2567
        %s2569 = sand.u32 %s230, 1
        %s2570 = smul.addr %s2569, 32
        %s2571 = scalar_lea.vmem [#allocation11], %s2570
        // Predicated region
        $region77: #{tpu_custom_call.1} parent=55 // pred_check
          %p2572 = pneg %p240
        $region78: #{tpu_custom_call.1} parent=55 // pred_check_branch
          %2574 = sbr.rel (%p2572) target = $region80
        $region79: #{tpu_custom_call.1} parent=55 // pred_region
          %s2576 = ssub.s32 512, 512
          %2577 = vsyncadd %s2568, %s2576
          %s2578 = smul.addr %s28, 4
          %s2579 = smul.addr %s2578, 128
          %s2580 = scalar_lea.hbm %s9, %s2579
          %s2582 = sshll.u32 %s2571, 4
          %s2583 = int_to_ptr.vmem [resolvable:$true] %s2582
          %2585 = dma.vmem_to_hbm [thread:$0]  %s2583, 512, %s2580, %s2568
        $region80: #{tpu_custom_call.1} parent=55 // pred_fallthru
          _
      $region56: #{tpu_custom_call.1} parent=5 // pred_fallthru
        _
      %p2586 = scmp.le.s32.totalorder 2, %s23
      // Predicated region
      $region81: #{tpu_custom_call.1} parent=5 // pred_check
        %p2587 = pneg %p2586
      $region82: #{tpu_custom_call.1} parent=5 // pred_check_branch
        %2589 = sbr.rel (%p2587) target = $region84
      $region83: #{tpu_custom_call.1} parent=5 // pred_region
        %s2590 = ssub.s32 %s23, 2
        // Predicated region
        $region85: #{tpu_custom_call.1} parent=83 // pred_check
          %p2591 = pneg %p246
        $region86: #{tpu_custom_call.1} parent=83 // pred_check_branch
          %2593 = sbr.rel (%p2591) target = $region88
        $region87: #{tpu_custom_call.1} parent=83 // pred_region
          %s2594 = sand.u32 %s231, 1
          %s2595 = scalar_lea.sflag [#allocation4], %s2594
          %s2596 = sand.u32 %s231, 1
          %s2597 = smul.addr %s2596, 32
          %s2598 = scalar_lea.vmem [#allocation11], %s2597
          %2599 = dma.done %s2595, 512
        $region88: #{tpu_custom_call.1} parent=83 // pred_fallthru
          _
      $region84: #{tpu_custom_call.1} parent=5 // pred_fallthru
        _
    $region6: #{tpu_custom_call.1} parent=1 // loop_footer
      %s27 = sadd.s32 1, %s23
    $region7: #{tpu_custom_call.1} parent=1 // loop_footer_branch
      %22 = sbr.rel target = $region3
    $region8: #{tpu_custom_call.1} parent=1 // loop_exit
      _
    %2600 = vsyncpa [#allocation3], 1
    %s2601 = scalar_lea.sflag [#allocation3], 1
    %2602 = vsyncpa %s2601, 1
    %2603 = vsyncpa [#allocation6], 1
    %2604 = vsyncpa [#allocation9], 1
    %2605 = vsyncpa [#allocation4], 1
    %s2606 = scalar_lea.sflag [#allocation4], 1
    %2607 = vsyncpa %s2606, 1

</llo_original>
